<compile_context>
chip_gen: v7x
topology: tpu7x:2x2x1
jax: 0.10.0
libtpu: 0.0.40
codegen_flags: <defaults>
</compile_context>

<pallas_src>
import functools

import jax
import jax.numpy as jnp
import numpy as np
from jax import lax
from jax.experimental import pallas as pl
from jax.experimental.pallas import tpu as pltpu

CONV_CFG = ((32, 8, 4), (64, 4, 2), (64, 3, 1))  # (out_channels, kernel, stride)
HIDDEN = 128


def _round_up(x, m):
    return (x + m - 1) // m * m


def _conv_out_hw(h, w, k, s):
    return (h - k) // s + 1, (w - k) // s + 1


def _elu(y):
    # PyTorch ELU(alpha=1); clamp the exp argument so the discarded positive
    # branch of the where never produces inf.
    return jnp.where(y > 0.0, y, jnp.exp(jnp.minimum(y, 0.0)) - 1.0)


# ---------------------------------------------------------------------------
# The single fused Pallas kernel (runs once per sample via the batch grid)
# ---------------------------------------------------------------------------
def _ac_kernel(p0_ref, w0_ref, b0_ref,
               g1_ref, w1_ref, b1_ref,
               g2_ref, w2_ref, b2_ref,
               wh1_ref, bh1_ref, wh2_ref, bh2_ref,
               out_ref, *, kk1, mpad1, kk2, mpad2, p2, n_action):
    f32, bf16 = jnp.float32, jnp.bfloat16

    def mxu(a_bf, w_bf):  # bf16 operands, f32 accumulation on the MXU
        return jnp.dot(a_bf, w_bf, preferred_element_type=f32)

    def conv_block(act_f32, g_ref, w_ref, b_ref, kk, mpad_out):
        # One stacked 0/1 gather matmul produces all k*k taps at once; the taps
        # are then laid side by side along the contraction dim so the conv is a
        # single dense K = k*k*C_in matmul.  Rows >= the number of valid output
        # positions are zero-padded (the next layer's gather never reads them).
        a_bf = act_f32.astype(bf16)                              # single cast
        stacked = mxu(g_ref[...], a_bf)                          # (kk*mpad_out, C_in)
        taps = [stacked[r * mpad_out:(r + 1) * mpad_out, :] for r in range(kk)]
        patches = jnp.concatenate(taps, axis=-1).astype(bf16)    # (mpad_out, kk*C_in)
        return _elu(mxu(patches, w_ref[...]) + b_ref[...])       # (mpad_out, C_out)

    # conv0: dense matmul on the pre-gathered patches (1/256 folded into w0)
    h = _elu(mxu(p0_ref[0], w0_ref[...]) + b0_ref[...])          # (mpad0, 32)
    h = conv_block(h, g1_ref, w1_ref, b1_ref, kk1, mpad1)        # (mpad1, 64)
    h = conv_block(h, g2_ref, w2_ref, b2_ref, kk2, mpad2)        # (mpad2, 64)

    # heads: NHWC flatten of the p2 valid conv2 rows, then the fused
    # actor||critic layer-1 (single K = p2*64 matmul) and the block-diagonal
    # layer-2 producing [actor logits | critic value].
    feat = h[0:p2, :].reshape(1, p2 * h.shape[-1]).astype(bf16)  # (1, p2*64)
    hid = _elu(mxu(feat, wh1_ref[...]) + bh1_ref[...])           # (1, 2*HIDDEN)
    out = mxu(hid.astype(bf16), wh2_ref[...]) + bh2_ref[...]     # (1, n_action+1)

    # softmax over the actor columns with EXACT normalization (fixes the
    # previous prob-sum assertion failure); critic column passes through.
    col = lax.broadcasted_iota(jnp.int32, out.shape, 1)
    is_act = col < n_action
    m = jnp.max(jnp.where(is_act, out, jnp.float32(-1e30)), axis=-1, keepdims=True)
    e = jnp.where(is_act, jnp.exp(out - m), 0.0)
    denom = jnp.sum(e, axis=-1, keepdims=True)
    out_ref[0] = jnp.where(is_act, e / denom, out)


# ---------------------------------------------------------------------------
# Host-side helpers (patches, batch-independent gather matrices, init)
# ---------------------------------------------------------------------------
def _conv0_patches(x_nhwc, k, s):
    """(N,H,W,C) -> ((N, OH*OW, C*k*k), OH, OW) via one XLA patches op."""
    N, H, W, C = x_nhwc.shape
    OH, OW = _conv_out_hw(H, W, k, s)
    p = lax.conv_general_dilated_patches(
        x_nhwc, (k, k), (s, s), "VALID",
        dimension_numbers=("NHWC", "HWIO", "NHWC"))
    return p.reshape(N, OH * OW, C * k * k), OH, OW


def _make_stacked_gather(oh, ow, k, s, iw, mpad_out, mpad_in):
    """Batch-independent stacked 0/1 gather (bf16, exact).

    g[r*mpad_out + m, p] = 1 iff input spatial row p feeds output row m at tap
    r = ki*k + kj.  Rows for padded m and columns for padded p stay zero.
    """
    g = np.zeros((k * k * mpad_out, mpad_in), np.float32)
    for ki in range(k):
        for kj in range(k):
            r = ki * k + kj
            for i in range(oh):
                for j in range(ow):
                    m = i * ow + j
                    p = (i * s + ki) * iw + (j * s + kj)
                    g[r * mpad_out + m, p] = 1.0
    return jnp.asarray(g, jnp.bfloat16)


def build_gathers(H, W):
    (_, k0, s0), (_, k1, s1), (_, k2, s2) = CONV_CFG
    oh0, ow0 = _conv_out_hw(H, W, k0, s0)
    oh1, ow1 = _conv_out_hw(oh0, ow0, k1, s1)
    oh2, ow2 = _conv_out_hw(oh1, ow1, k2, s2)
    mpad0 = _round_up(oh0 * ow0, 8)
    mpad1 = _round_up(oh1 * ow1, 8)
    mpad2 = _round_up(oh2 * ow2, 8)
    g1 = _make_stacked_gather(oh1, ow1, k1, s1, ow0, mpad1, mpad0)
    g2 = _make_stacked_gather(oh2, ow2, k2, s2, ow1, mpad2, mpad1)
    return g1, g2


def init_params(key, in_channels, n_action, H, W):
    """Mirrors the module init (uniform 1/sqrt(fan_in) convs+biases,
    xavier_uniform linear weights, uniform linear biases).  Weights are stored
    in the layouts the fused kernel consumes; the 1/256 input scale is folded
    into conv0's weight.  Matmul weights are bf16, biases f32.
    NOTE: if importing real PyTorch weights, permute head layer-1 rows from the
    NCHW (c,h,w) flatten order to the (h,w,c) order used here."""
    keys = jax.random.split(key, 14)
    f32, bf16 = jnp.float32, jnp.bfloat16

    def uni(k, shape, bound):
        return jax.random.uniform(k, shape, f32, -bound, bound)

    params = {}
    oh, ow, cin = H, W, in_channels
    kidx = 0
    for li, (cout, ksz, st) in enumerate(CONV_CFG):
        fan_in = cin * ksz * ksz
        bound = 1.0 / fan_in ** 0.5
        w = uni(keys[kidx], (fan_in, cout), bound); kidx += 1   # (k*k*Cin, Cout), HWIO-flat rows
        if li == 0:
            w = w * (1.0 / 256.0)                               # fold the x/256 input scale
        params[f"conv{li}_w"] = w.astype(bf16)
        params[f"conv{li}_b"] = uni(keys[kidx], (1, cout), bound); kidx += 1
        oh, ow = _conv_out_hw(oh, ow, ksz, st)
        cin = cout

    P = oh * ow                      # conv2 spatial positions
    F = cin * P                      # == AC._get_conv_out(input_shape)
    xb1 = (6.0 / (F + HIDDEN)) ** 0.5
    aw1 = uni(keys[kidx], (F, HIDDEN), xb1); kidx += 1
    cw1 = uni(keys[kidx], (F, HIDDEN), xb1); kidx += 1
    params["head_w1"] = jnp.concatenate([aw1, cw1], axis=1).astype(bf16)   # (F, 256), NHWC rows
    bb1 = 1.0 / F ** 0.5
    params["head_b1"] = jnp.concatenate(
        [uni(keys[kidx], (1, HIDDEN), bb1), uni(keys[kidx + 1], (1, HIDDEN), bb1)], axis=1)
    kidx += 2

    aw2 = uni(keys[kidx], (HIDDEN, n_action), (6.0 / (HIDDEN + n_action)) ** 0.5); kidx += 1
    cw2 = uni(keys[kidx], (HIDDEN, 1), (6.0 / (HIDDEN + 1)) ** 0.5); kidx += 1
    wh2 = jnp.zeros((2 * HIDDEN, n_action + 1), f32)            # block-diagonal layer 2
    wh2 = wh2.at[:HIDDEN, :n_action].set(aw2)
    wh2 = wh2.at[HIDDEN:, n_action:].set(cw2)
    params["head_w2"] = wh2.astype(bf16)
    bb2 = 1.0 / HIDDEN ** 0.5
    params["head_b2"] = jnp.concatenate(
        [uni(keys[kidx], (1, n_action), bb2), uni(keys[kidx + 1], (1, 1), bb2)], axis=1)
    return params, F


def _resident_spec(shape):
    nd = len(shape)

    def idx(b):
        return (0,) * nd

    return pl.BlockSpec(shape, idx)


# ---------------------------------------------------------------------------
# Forward pass (one pallas_call, batch grid) and a plain-JAX reference
# ---------------------------------------------------------------------------
@functools.partial(jax.jit, static_argnames=("n_action",))
def ac_forward(x, params, gathers, n_action):
    """Mirror of AC.forward: (softmax(actor(flat(conv(x/256)))), critic(...))."""
    g1, g2 = gathers
    N = x.shape[0]
    (c0, k0, s0), (c1, k1, s1), (c2, k2, s2) = CONV_CFG

    x_nhwc = jnp.transpose(x.astype(jnp.float32), (0, 2, 3, 1))
    p0, oh0, ow0 = _conv0_patches(x_nhwc, k0, s0)
    m0 = oh0 * ow0
    mpad0 = _round_up(m0, 8)
    k0feat = p0.shape[-1]
    if mpad0 != m0:
        p0 = jnp.pad(p0, ((0, 0), (0, mpad0 - m0), (0, 0)))
    p0 = p0.astype(jnp.bfloat16)            # exact: patch values are ints < 256

    kk1, kk2 = k1 * k1, k2 * k2
    mpad1 = g1.shape[0] // kk1
    mpad2 = g2.shape[0] // kk2
    p2 = params["head_w1"].shape[0] // c2   # valid conv2 spatial positions

    kernel = functools.partial(
        _ac_kernel, kk1=kk1, mpad1=mpad1, kk2=kk2, mpad2=mpad2,
        p2=p2, n_action=n_action)

    operands = (p0,
                params["conv0_w"], params["conv0_b"],
                g1, params["conv1_w"], params["conv1_b"],
                g2, params["conv2_w"], params["conv2_b"],
                params["head_w1"], params["head_b1"],
                params["head_w2"], params["head_b2"])

    in_specs = [pl.BlockSpec((1, mpad0, k0feat), lambda b: (b, 0, 0))]
    in_specs += [_resident_spec(a.shape) for a in operands[1:]]
    out_specs = pl.BlockSpec((1, 1, n_action + 1), lambda b: (b, 0, 0))

    flops = 2 * N * (mpad0 * k0feat * c0
                     + g1.shape[0] * g1.shape[1] * c0
                     + mpad1 * (kk1 * c0) * c1
                     + g2.shape[0] * g2.shape[1] * c1
                     + mpad2 * (kk2 * c1) * c2
                     + p2 * c2 * 2 * HIDDEN
                     + 2 * HIDDEN * (n_action + 1))
    transcendentals = N * (mpad0 * c0 + mpad1 * c1 + mpad2 * c2 + 2 * HIDDEN + n_action)
    bytes_accessed = int(sum(int(a.size) * a.dtype.itemsize for a in operands)
                         + N * (n_action + 1) * 4)

    out = pl.pallas_call(
        kernel,
        out_shape=jax.ShapeDtypeStruct((N, 1, n_action + 1), jnp.float32),
        grid=(N,),
        in_specs=in_specs,
        out_specs=out_specs,
        compiler_params=pltpu.CompilerParams(
            dimension_semantics=("parallel",),
            vmem_limit_bytes=32 * 1024 * 1024),
        cost_estimate=pl.CostEstimate(
            flops=flops, transcendentals=transcendentals,
            bytes_accessed=bytes_accessed),
    )(*operands)

    out = out[:, 0, :]
    return out[:, :n_action], out[:, n_action:]


def ac_reference(x, params, n_action):
    """Plain-JAX f32 reference of the same network (correctness check)."""
    f32 = jnp.float32
    (c0, k0, s0), (c1, k1, s1), (c2, k2, s2) = CONV_CFG
    x_nhwc = jnp.transpose(x.astype(f32), (0, 2, 3, 1))
    N = x_nhwc.shape[0]
    p0, oh0, ow0 = _conv0_patches(x_nhwc, k0, s0)
    a = _elu(p0 @ params["conv0_w"].astype(f32) + params["conv0_b"])
    a = a.reshape(N, oh0, ow0, c0)
    w1 = params["conv1_w"].astype(f32).reshape(k1, k1, c0, c1)
    a = _elu(lax.conv_general_dilated(a, w1, (s1, s1), "VALID",
             dimension_numbers=("NHWC", "HWIO", "NHWC")) + params["conv1_b"])
    w2 = params["conv2_w"].astype(f32).reshape(k2, k2, c1, c2)
    a = _elu(lax.conv_general_dilated(a, w2, (s2, s2), "VALID",
             dimension_numbers=("NHWC", "HWIO", "NHWC")) + params["conv2_b"])
    feat = a.reshape(N, -1)
    h = _elu(feat @ params["head_w1"].astype(f32) + params["head_b1"])
    out = h @ params["head_w2"].astype(f32) + params["head_b2"]
    return jax.nn.softmax(out[:, :n_action], axis=-1), out[:, n_action:]


if __name__ == "__main__":
    key = jax.random.PRNGKey(0)
    kx, kp = jax.random.split(key)

    # smallest spatial size the 8/4 -> 4/2 -> 3/1 conv stack accepts is 36x36
    N, C, H, W = 2, 4, 36, 36
    n_action = 6

    x = jax.random.randint(kx, (N, C, H, W), 0, 256).astype(jnp.float32)
    params, conv_out = init_params(kp, C, n_action, H, W)
    gathers = build_gathers(H, W)

    probs, value = ac_forward(x, params, gathers, n_action)
    jax.block_until_ready((probs, value))

    assert probs.shape == (N, n_action)
    assert value.shape == (N, 1)
    assert bool(jnp.all(jnp.abs(jnp.sum(probs, axis=-1) - 1.0) < 1e-3))

    probs_ref, value_ref = ac_reference(x, params, n_action)
    assert bool(jnp.allclose(probs, probs_ref, atol=3e-2, rtol=3e-2))
    assert bool(jnp.allclose(value, value_ref, atol=3e-2, rtol=3e-2))
    print("KERNEL_OK")
</pallas_src>

<mosaic_0001>
module attributes {stable_mosaic.version = 11 : i64} {
  func.func @_ac_kernel(%arg0: i32, %arg1: memref<1x64x256xbf16, #tpu.memory_space<vmem>>, %arg2: memref<256x32xbf16, #tpu.memory_space<vmem>>, %arg3: memref<1x32xf32, #tpu.memory_space<vmem>>, %arg4: memref<256x64xbf16, #tpu.memory_space<vmem>>, %arg5: memref<512x64xbf16, #tpu.memory_space<vmem>>, %arg6: memref<1x64xf32, #tpu.memory_space<vmem>>, %arg7: memref<72x16xbf16, #tpu.memory_space<vmem>>, %arg8: memref<576x64xbf16, #tpu.memory_space<vmem>>, %arg9: memref<1x64xf32, #tpu.memory_space<vmem>>, %arg10: memref<64x256xbf16, #tpu.memory_space<vmem>>, %arg11: memref<1x256xf32, #tpu.memory_space<vmem>>, %arg12: memref<256x7xbf16, #tpu.memory_space<vmem>>, %arg13: memref<1x7xf32, #tpu.memory_space<vmem>>, %arg14: memref<1x1x7xf32, #tpu.memory_space<vmem>>) attributes {dimension_semantics = [#tpu.dimension_semantics<parallel>], iteration_bounds = array<i64: 2>, scalar_prefetch = 0 : i64, scratch_operands = 0 : i64, tpu.core_type = #tpu.core_type<tc>, window_params = [{transform_indices = @transform_0, window_bounds = array<i64: 1, 64, 256>}, {pipeline_mode = #tpu.pipeline_mode<synchronous>, transform_indices = @transform_1, window_bounds = array<i64: 256, 32>}, {pipeline_mode = #tpu.pipeline_mode<synchronous>, transform_indices = @transform_2, window_bounds = array<i64: 1, 32>}, {pipeline_mode = #tpu.pipeline_mode<synchronous>, transform_indices = @transform_3, window_bounds = array<i64: 256, 64>}, {pipeline_mode = #tpu.pipeline_mode<synchronous>, transform_indices = @transform_4, window_bounds = array<i64: 512, 64>}, {pipeline_mode = #tpu.pipeline_mode<synchronous>, transform_indices = @transform_5, window_bounds = array<i64: 1, 64>}, {pipeline_mode = #tpu.pipeline_mode<synchronous>, transform_indices = @transform_6, window_bounds = array<i64: 72, 16>}, {pipeline_mode = #tpu.pipeline_mode<synchronous>, transform_indices = @transform_7, window_bounds = array<i64: 576, 64>}, {pipeline_mode = #tpu.pipeline_mode<synchronous>, transform_indices = @transform_8, window_bounds = array<i64: 1, 64>}, {pipeline_mode = #tpu.pipeline_mode<synchronous>, transform_indices = @transform_9, window_bounds = array<i64: 64, 256>}, {pipeline_mode = #tpu.pipeline_mode<synchronous>, transform_indices = @transform_10, window_bounds = array<i64: 1, 256>}, {pipeline_mode = #tpu.pipeline_mode<synchronous>, transform_indices = @transform_11, window_bounds = array<i64: 256, 7>}, {pipeline_mode = #tpu.pipeline_mode<synchronous>, transform_indices = @transform_12, window_bounds = array<i64: 1, 7>}, {transform_indices = @transform_13, window_bounds = array<i64: 1, 1, 7>}]} {
    %c0 = arith.constant 0 : index
    %c0_0 = arith.constant 0 : index
    %c0_1 = arith.constant 0 : index
    %0 = vector.load %arg1[%c0, %c0_0, %c0_1] : memref<1x64x256xbf16, #tpu.memory_space<vmem>>, vector<1x64x256xbf16>
    %1 = vector.shape_cast %0 : vector<1x64x256xbf16> to vector<64x256xbf16>
    %c0_2 = arith.constant 0 : index
    %c0_3 = arith.constant 0 : index
    %2 = vector.load %arg2[%c0_2, %c0_3] : memref<256x32xbf16, #tpu.memory_space<vmem>>, vector<256x32xbf16>
    %cst = arith.constant dense<0.000000e+00> : vector<64x32xf32>
    %3 = tpu.matmul %1, %2, %cst {dimension_numbers = #tpu.dot_dimension_numbers<[1], [0], [0], [1], [0, 0, 1, 1], [], []>} : vector<64x256xbf16>, vector<256x32xbf16>, vector<64x32xf32> -> vector<64x32xf32>
    %c0_4 = arith.constant 0 : index
    %c0_5 = arith.constant 0 : index
    %4 = vector.load %arg3[%c0_4, %c0_5] : memref<1x32xf32, #tpu.memory_space<vmem>>, vector<1x32xf32>
    %5 = vector.broadcast %4 : vector<1x32xf32> to vector<64x32xf32>
    %6 = arith.addf %3, %5 : vector<64x32xf32>
    %cst_6 = arith.constant 0.000000e+00 : f32
    %7 = vector.broadcast %cst_6 : f32 to vector<64x32xf32>
    %8 = arith.cmpf ogt, %6, %7 : vector<64x32xf32>
    %cst_7 = arith.constant 0.000000e+00 : f32
    %9 = vector.broadcast %cst_7 : f32 to vector<64x32xf32>
    %10 = arith.minimumf %6, %9 : vector<64x32xf32>
    %11 = math.exp %10 : vector<64x32xf32>
    %cst_8 = arith.constant 1.000000e+00 : f32
    %12 = vector.broadcast %cst_8 : f32 to vector<64x32xf32>
    %13 = arith.subf %11, %12 : vector<64x32xf32>
    %14 = arith.select %8, %6, %13 : vector<64x32xi1>, vector<64x32xf32>
    %15 = arith.truncf %14 : vector<64x32xf32> to vector<64x32xbf16>
    %c0_9 = arith.constant 0 : index
    %c0_10 = arith.constant 0 : index
    %16 = vector.load %arg4[%c0_9, %c0_10] : memref<256x64xbf16, #tpu.memory_space<vmem>>, vector<256x64xbf16>
    %cst_11 = arith.constant dense<0.000000e+00> : vector<256x32xf32>
    %17 = tpu.matmul %16, %15, %cst_11 {dimension_numbers = #tpu.dot_dimension_numbers<[1], [0], [0], [1], [0, 0, 1, 1], [], []>} : vector<256x64xbf16>, vector<64x32xbf16>, vector<256x32xf32> -> vector<256x32xf32>
    %18 = vector.extract_strided_slice %17 {offsets = [0, 0], sizes = [16, 32], strides = [1, 1]} : vector<256x32xf32> to vector<16x32xf32>
    %19 = vector.extract_strided_slice %17 {offsets = [16, 0], sizes = [16, 32], strides = [1, 1]} : vector<256x32xf32> to vector<16x32xf32>
    %20 = vector.extract_strided_slice %17 {offsets = [32, 0], sizes = [16, 32], strides = [1, 1]} : vector<256x32xf32> to vector<16x32xf32>
    %21 = vector.extract_strided_slice %17 {offsets = [48, 0], sizes = [16, 32], strides = [1, 1]} : vector<256x32xf32> to vector<16x32xf32>
    %22 = vector.extract_strided_slice %17 {offsets = [64, 0], sizes = [16, 32], strides = [1, 1]} : vector<256x32xf32> to vector<16x32xf32>
    %23 = vector.extract_strided_slice %17 {offsets = [80, 0], sizes = [16, 32], strides = [1, 1]} : vector<256x32xf32> to vector<16x32xf32>
    %24 = vector.extract_strided_slice %17 {offsets = [96, 0], sizes = [16, 32], strides = [1, 1]} : vector<256x32xf32> to vector<16x32xf32>
    %25 = vector.extract_strided_slice %17 {offsets = [112, 0], sizes = [16, 32], strides = [1, 1]} : vector<256x32xf32> to vector<16x32xf32>
    %26 = vector.extract_strided_slice %17 {offsets = [128, 0], sizes = [16, 32], strides = [1, 1]} : vector<256x32xf32> to vector<16x32xf32>
    %27 = vector.extract_strided_slice %17 {offsets = [144, 0], sizes = [16, 32], strides = [1, 1]} : vector<256x32xf32> to vector<16x32xf32>
    %28 = vector.extract_strided_slice %17 {offsets = [160, 0], sizes = [16, 32], strides = [1, 1]} : vector<256x32xf32> to vector<16x32xf32>
    %29 = vector.extract_strided_slice %17 {offsets = [176, 0], sizes = [16, 32], strides = [1, 1]} : vector<256x32xf32> to vector<16x32xf32>
    %30 = vector.extract_strided_slice %17 {offsets = [192, 0], sizes = [16, 32], strides = [1, 1]} : vector<256x32xf32> to vector<16x32xf32>
    %31 = vector.extract_strided_slice %17 {offsets = [208, 0], sizes = [16, 32], strides = [1, 1]} : vector<256x32xf32> to vector<16x32xf32>
    %32 = vector.extract_strided_slice %17 {offsets = [224, 0], sizes = [16, 32], strides = [1, 1]} : vector<256x32xf32> to vector<16x32xf32>
    %33 = vector.extract_strided_slice %17 {offsets = [240, 0], sizes = [16, 32], strides = [1, 1]} : vector<256x32xf32> to vector<16x32xf32>
    %34 = tpu.concatenate %18, %19, %20, %21, %22, %23, %24, %25, %26, %27, %28, %29, %30, %31, %32, %33 in 1 : vector<16x32xf32>, vector<16x32xf32>, vector<16x32xf32>, vector<16x32xf32>, vector<16x32xf32>, vector<16x32xf32>, vector<16x32xf32>, vector<16x32xf32>, vector<16x32xf32>, vector<16x32xf32>, vector<16x32xf32>, vector<16x32xf32>, vector<16x32xf32>, vector<16x32xf32>, vector<16x32xf32>, vector<16x32xf32> -> vector<16x512xf32>
    %35 = arith.truncf %34 : vector<16x512xf32> to vector<16x512xbf16>
    %c0_12 = arith.constant 0 : index
    %c0_13 = arith.constant 0 : index
    %36 = vector.load %arg5[%c0_12, %c0_13] : memref<512x64xbf16, #tpu.memory_space<vmem>>, vector<512x64xbf16>
    %cst_14 = arith.constant dense<0.000000e+00> : vector<16x64xf32>
    %37 = tpu.matmul %35, %36, %cst_14 {dimension_numbers = #tpu.dot_dimension_numbers<[1], [0], [0], [1], [0, 0, 1, 1], [], []>} : vector<16x512xbf16>, vector<512x64xbf16>, vector<16x64xf32> -> vector<16x64xf32>
    %c0_15 = arith.constant 0 : index
    %c0_16 = arith.constant 0 : index
    %38 = vector.load %arg6[%c0_15, %c0_16] : memref<1x64xf32, #tpu.memory_space<vmem>>, vector<1x64xf32>
    %39 = vector.broadcast %38 : vector<1x64xf32> to vector<16x64xf32>
    %40 = arith.addf %37, %39 : vector<16x64xf32>
    %cst_17 = arith.constant 0.000000e+00 : f32
    %41 = vector.broadcast %cst_17 : f32 to vector<16x64xf32>
    %42 = arith.cmpf ogt, %40, %41 : vector<16x64xf32>
    %cst_18 = arith.constant 0.000000e+00 : f32
    %43 = vector.broadcast %cst_18 : f32 to vector<16x64xf32>
    %44 = arith.minimumf %40, %43 : vector<16x64xf32>
    %45 = math.exp %44 : vector<16x64xf32>
    %cst_19 = arith.constant 1.000000e+00 : f32
    %46 = vector.broadcast %cst_19 : f32 to vector<16x64xf32>
    %47 = arith.subf %45, %46 : vector<16x64xf32>
    %48 = arith.select %42, %40, %47 : vector<16x64xi1>, vector<16x64xf32>
    %49 = arith.truncf %48 : vector<16x64xf32> to vector<16x64xbf16>
    %c0_20 = arith.constant 0 : index
    %c0_21 = arith.constant 0 : index
    %50 = vector.load %arg7[%c0_20, %c0_21] : memref<72x16xbf16, #tpu.memory_space<vmem>>, vector<72x16xbf16>
    %cst_22 = arith.constant dense<0.000000e+00> : vector<72x64xf32>
    %51 = tpu.matmul %50, %49, %cst_22 {dimension_numbers = #tpu.dot_dimension_numbers<[1], [0], [0], [1], [0, 0, 1, 1], [], []>} : vector<72x16xbf16>, vector<16x64xbf16>, vector<72x64xf32> -> vector<72x64xf32>
    %52 = vector.extract_strided_slice %51 {offsets = [0, 0], sizes = [8, 64], strides = [1, 1]} : vector<72x64xf32> to vector<8x64xf32>
    %53 = vector.extract_strided_slice %51 {offsets = [8, 0], sizes = [8, 64], strides = [1, 1]} : vector<72x64xf32> to vector<8x64xf32>
    %54 = vector.extract_strided_slice %51 {offsets = [16, 0], sizes = [8, 64], strides = [1, 1]} : vector<72x64xf32> to vector<8x64xf32>
    %55 = vector.extract_strided_slice %51 {offsets = [24, 0], sizes = [8, 64], strides = [1, 1]} : vector<72x64xf32> to vector<8x64xf32>
    %56 = vector.extract_strided_slice %51 {offsets = [32, 0], sizes = [8, 64], strides = [1, 1]} : vector<72x64xf32> to vector<8x64xf32>
    %57 = vector.extract_strided_slice %51 {offsets = [40, 0], sizes = [8, 64], strides = [1, 1]} : vector<72x64xf32> to vector<8x64xf32>
    %58 = vector.extract_strided_slice %51 {offsets = [48, 0], sizes = [8, 64], strides = [1, 1]} : vector<72x64xf32> to vector<8x64xf32>
    %59 = vector.extract_strided_slice %51 {offsets = [56, 0], sizes = [8, 64], strides = [1, 1]} : vector<72x64xf32> to vector<8x64xf32>
    %60 = vector.extract_strided_slice %51 {offsets = [64, 0], sizes = [8, 64], strides = [1, 1]} : vector<72x64xf32> to vector<8x64xf32>
    %61 = tpu.concatenate %52, %53, %54, %55, %56, %57, %58, %59, %60 in 1 : vector<8x64xf32>, vector<8x64xf32>, vector<8x64xf32>, vector<8x64xf32>, vector<8x64xf32>, vector<8x64xf32>, vector<8x64xf32>, vector<8x64xf32>, vector<8x64xf32> -> vector<8x576xf32>
    %62 = arith.truncf %61 : vector<8x576xf32> to vector<8x576xbf16>
    %c0_23 = arith.constant 0 : index
    %c0_24 = arith.constant 0 : index
    %63 = vector.load %arg8[%c0_23, %c0_24] : memref<576x64xbf16, #tpu.memory_space<vmem>>, vector<576x64xbf16>
    %cst_25 = arith.constant dense<0.000000e+00> : vector<8x64xf32>
    %64 = tpu.matmul %62, %63, %cst_25 {dimension_numbers = #tpu.dot_dimension_numbers<[1], [0], [0], [1], [0, 0, 1, 1], [], []>} : vector<8x576xbf16>, vector<576x64xbf16>, vector<8x64xf32> -> vector<8x64xf32>
    %c0_26 = arith.constant 0 : index
    %c0_27 = arith.constant 0 : index
    %65 = vector.load %arg9[%c0_26, %c0_27] : memref<1x64xf32, #tpu.memory_space<vmem>>, vector<1x64xf32>
    %66 = vector.broadcast %65 : vector<1x64xf32> to vector<8x64xf32>
    %67 = arith.addf %64, %66 : vector<8x64xf32>
    %cst_28 = arith.constant 0.000000e+00 : f32
    %68 = vector.broadcast %cst_28 : f32 to vector<8x64xf32>
    %69 = arith.cmpf ogt, %67, %68 : vector<8x64xf32>
    %cst_29 = arith.constant 0.000000e+00 : f32
    %70 = vector.broadcast %cst_29 : f32 to vector<8x64xf32>
    %71 = arith.minimumf %67, %70 : vector<8x64xf32>
    %72 = math.exp %71 : vector<8x64xf32>
    %cst_30 = arith.constant 1.000000e+00 : f32
    %73 = vector.broadcast %cst_30 : f32 to vector<8x64xf32>
    %74 = arith.subf %72, %73 : vector<8x64xf32>
    %75 = arith.select %69, %67, %74 : vector<8x64xi1>, vector<8x64xf32>
    %76 = vector.extract_strided_slice %75 {offsets = [0, 0], sizes = [1, 64], strides = [1, 1]} : vector<8x64xf32> to vector<1x64xf32>
    %77 = arith.truncf %76 : vector<1x64xf32> to vector<1x64xbf16>
    %c0_31 = arith.constant 0 : index
    %c0_32 = arith.constant 0 : index
    %78 = vector.load %arg10[%c0_31, %c0_32] : memref<64x256xbf16, #tpu.memory_space<vmem>>, vector<64x256xbf16>
    %cst_33 = arith.constant dense<0.000000e+00> : vector<1x256xf32>
    %79 = tpu.matmul %77, %78, %cst_33 {dimension_numbers = #tpu.dot_dimension_numbers<[1], [0], [0], [1], [0, 0, 1, 1], [], []>} : vector<1x64xbf16>, vector<64x256xbf16>, vector<1x256xf32> -> vector<1x256xf32>
    %c0_34 = arith.constant 0 : index
    %c0_35 = arith.constant 0 : index
    %80 = vector.load %arg11[%c0_34, %c0_35] : memref<1x256xf32, #tpu.memory_space<vmem>>, vector<1x256xf32>
    %81 = arith.addf %79, %80 : vector<1x256xf32>
    %cst_36 = arith.constant 0.000000e+00 : f32
    %82 = vector.broadcast %cst_36 : f32 to vector<1x256xf32>
    %83 = arith.cmpf ogt, %81, %82 : vector<1x256xf32>
    %cst_37 = arith.constant 0.000000e+00 : f32
    %84 = vector.broadcast %cst_37 : f32 to vector<1x256xf32>
    %85 = arith.minimumf %81, %84 : vector<1x256xf32>
    %86 = math.exp %85 : vector<1x256xf32>
    %cst_38 = arith.constant 1.000000e+00 : f32
    %87 = vector.broadcast %cst_38 : f32 to vector<1x256xf32>
    %88 = arith.subf %86, %87 : vector<1x256xf32>
    %89 = arith.select %83, %81, %88 : vector<1x256xi1>, vector<1x256xf32>
    %90 = arith.truncf %89 : vector<1x256xf32> to vector<1x256xbf16>
    %c0_39 = arith.constant 0 : index
    %c0_40 = arith.constant 0 : index
    %91 = vector.load %arg12[%c0_39, %c0_40] : memref<256x7xbf16, #tpu.memory_space<vmem>>, vector<256x7xbf16>
    %cst_41 = arith.constant dense<0.000000e+00> : vector<1x7xf32>
    %92 = tpu.matmul %90, %91, %cst_41 {dimension_numbers = #tpu.dot_dimension_numbers<[1], [0], [0], [1], [0, 0, 1, 1], [], []>} : vector<1x256xbf16>, vector<256x7xbf16>, vector<1x7xf32> -> vector<1x7xf32>
    %c0_42 = arith.constant 0 : index
    %c0_43 = arith.constant 0 : index
    %93 = vector.load %arg13[%c0_42, %c0_43] : memref<1x7xf32, #tpu.memory_space<vmem>>, vector<1x7xf32>
    %94 = arith.addf %92, %93 : vector<1x7xf32>
    %95 = tpu.iota {dimensions = array<i32: 1>} : vector<1x7xi32>
    %c6_i32 = arith.constant 6 : i32
    %96 = vector.broadcast %c6_i32 : i32 to vector<1x7xi32>
    %97 = arith.cmpi slt, %95, %96 : vector<1x7xi32>
    %cst_44 = arith.constant -1.000000e+30 : f32
    %98 = vector.broadcast %cst_44 : f32 to vector<1x7xf32>
    %99 = arith.select %97, %94, %98 : vector<1x7xi1>, vector<1x7xf32>
    %cst_45 = arith.constant dense<0xFF800000> : vector<1xf32>
    %100 = vector.multi_reduction <maximumf>, %99, %cst_45 [1] : vector<1x7xf32> to vector<1xf32>
    %101 = vector.shape_cast %100 : vector<1xf32> to vector<1x1xf32>
    %102 = vector.broadcast %101 : vector<1x1xf32> to vector<1x7xf32>
    %103 = arith.subf %94, %102 : vector<1x7xf32>
    %104 = math.exp %103 : vector<1x7xf32>
    %cst_46 = arith.constant 0.000000e+00 : f32
    %105 = vector.broadcast %cst_46 : f32 to vector<1x7xf32>
    %106 = arith.select %97, %104, %105 : vector<1x7xi1>, vector<1x7xf32>
    %cst_47 = arith.constant dense<0.000000e+00> : vector<1xf32>
    %107 = vector.multi_reduction <add>, %106, %cst_47 [1] : vector<1x7xf32> to vector<1xf32>
    %108 = vector.shape_cast %107 : vector<1xf32> to vector<1x1xf32>
    %109 = vector.broadcast %108 : vector<1x1xf32> to vector<1x7xf32>
    %110 = arith.divf %106, %109 : vector<1x7xf32>
    %111 = arith.select %97, %110, %94 : vector<1x7xi1>, vector<1x7xf32>
    %c0_48 = arith.constant 0 : index
    %c0_49 = arith.constant 0 : index
    %c0_50 = arith.constant 0 : index
    %112 = vector.load %arg14[%c0_48, %c0_49, %c0_50] : memref<1x1x7xf32, #tpu.memory_space<vmem>>, vector<1x1x7xf32>
    %113 = vector.shape_cast %112 : vector<1x1x7xf32> to vector<1x7xf32>
    %114 = vector.shape_cast %111 : vector<1x7xf32> to vector<1x1x7xf32>
    tpu.vector_store %arg14[%c0_48, %c0_49, %c0_50], %114 {strides = array<i32>} : memref<1x1x7xf32, #tpu.memory_space<vmem>>, vector<1x1x7xf32>,
    return
  }
  func.func @transform_0(%arg0: i32) -> (i32, i32, i32) {
    %c0_i32 = arith.constant 0 : i32
    %c0_i32_0 = arith.constant 0 : i32
    %c0_i32_1 = arith.constant 0 : i32
    return %arg0, %c0_i32, %c0_i32_0 : i32, i32, i32
  }
  func.func @transform_1(%arg0: i32) -> (i32, i32) {
    %c0_i32 = arith.constant 0 : i32
    %c0_i32_0 = arith.constant 0 : i32
    %c0_i32_1 = arith.constant 0 : i32
    return %c0_i32, %c0_i32_0 : i32, i32
  }
  func.func @transform_2(%arg0: i32) -> (i32, i32) {
    %c0_i32 = arith.constant 0 : i32
    %c0_i32_0 = arith.constant 0 : i32
    %c0_i32_1 = arith.constant 0 : i32
    return %c0_i32, %c0_i32_0 : i32, i32
  }
  func.func @transform_3(%arg0: i32) -> (i32, i32) {
    %c0_i32 = arith.constant 0 : i32
    %c0_i32_0 = arith.constant 0 : i32
    %c0_i32_1 = arith.constant 0 : i32
    return %c0_i32, %c0_i32_0 : i32, i32
  }
  func.func @transform_4(%arg0: i32) -> (i32, i32) {
    %c0_i32 = arith.constant 0 : i32
    %c0_i32_0 = arith.constant 0 : i32
    %c0_i32_1 = arith.constant 0 : i32
    return %c0_i32, %c0_i32_0 : i32, i32
  }
  func.func @transform_5(%arg0: i32) -> (i32, i32) {
    %c0_i32 = arith.constant 0 : i32
    %c0_i32_0 = arith.constant 0 : i32
    %c0_i32_1 = arith.constant 0 : i32
    return %c0_i32, %c0_i32_0 : i32, i32
  }
  func.func @transform_6(%arg0: i32) -> (i32, i32) {
    %c0_i32 = arith.constant 0 : i32
    %c0_i32_0 = arith.constant 0 : i32
    %c0_i32_1 = arith.constant 0 : i32
    return %c0_i32, %c0_i32_0 : i32, i32
  }
  func.func @transform_7(%arg0: i32) -> (i32, i32) {
    %c0_i32 = arith.constant 0 : i32
    %c0_i32_0 = arith.constant 0 : i32
    %c0_i32_1 = arith.constant 0 : i32
    return %c0_i32, %c0_i32_0 : i32, i32
  }
  func.func @transform_8(%arg0: i32) -> (i32, i32) {
    %c0_i32 = arith.constant 0 : i32
    %c0_i32_0 = arith.constant 0 : i32
    %c0_i32_1 = arith.constant 0 : i32
    return %c0_i32, %c0_i32_0 : i32, i32
  }
  func.func @transform_9(%arg0: i32) -> (i32, i32) {
    %c0_i32 = arith.constant 0 : i32
    %c0_i32_0 = arith.constant 0 : i32
    %c0_i32_1 = arith.constant 0 : i32
    return %c0_i32, %c0_i32_0 : i32, i32
  }
  func.func @transform_10(%arg0: i32) -> (i32, i32) {
    %c0_i32 = arith.constant 0 : i32
    %c0_i32_0 = arith.constant 0 : i32
    %c0_i32_1 = arith.constant 0 : i32
    return %c0_i32, %c0_i32_0 : i32, i32
  }
  func.func @transform_11(%arg0: i32) -> (i32, i32) {
    %c0_i32 = arith.constant 0 : i32
    %c0_i32_0 = arith.constant 0 : i32
    %c0_i32_1 = arith.constant 0 : i32
    return %c0_i32, %c0_i32_0 : i32, i32
  }
  func.func @transform_12(%arg0: i32) -> (i32, i32) {
    %c0_i32 = arith.constant 0 : i32
    %c0_i32_0 = arith.constant 0 : i32
    %c0_i32_1 = arith.constant 0 : i32
    return %c0_i32, %c0_i32_0 : i32, i32
  }
  func.func @transform_13(%arg0: i32) -> (i32, i32, i32) {
    %c0_i32 = arith.constant 0 : i32
    %c0_i32_0 = arith.constant 0 : i32
    %c0_i32_1 = arith.constant 0 : i32
    return %arg0, %c0_i32, %c0_i32_0 : i32, i32, i32
  }
}

</mosaic_0001>

<llo_original>
// kernel: ac_forward.1
$region0: #{ac_forward.1}
  #allocation0 [shape = 'u32[]', space=smem, size = 0x4, offset = 0x4, fixed_abs, tag = 'smem constant byte address 0x4 - core index']
  #allocation1 [shape = 'u32[144,128]{1,0:T(1,128)}', space=vmem, size = 0x12000, scoped, tag = 'internal scratch']
  %s0 = inlined_call_operand.vmem [shape: bf16[2,64,256], index: 0, kind: input, shape index: {}]
  %s1 = inlined_call_operand.vmem [shape: bf16[256,32], index: 1, kind: input, shape index: {}]
  %s2 = inlined_call_operand.vmem [shape: f32[1,32], index: 2, kind: input, shape index: {}]
  %s3 = inlined_call_operand.vmem [shape: bf16[256,64], index: 3, kind: input, shape index: {}]
  %s4 = inlined_call_operand.vmem [shape: bf16[512,64], index: 4, kind: input, shape index: {}]
  %s5 = inlined_call_operand.vmem [shape: f32[1,64], index: 5, kind: input, shape index: {}]
  %s6 = inlined_call_operand.vmem [shape: bf16[72,16], index: 6, kind: input, shape index: {}]
  %s7 = inlined_call_operand.vmem [shape: bf16[576,64], index: 7, kind: input, shape index: {}]
  %s8 = inlined_call_operand.vmem [shape: f32[1,64], index: 8, kind: input, shape index: {}]
  %s9 = inlined_call_operand.vmem [shape: bf16[64,256], index: 9, kind: input, shape index: {}]
  %s10 = inlined_call_operand.vmem [shape: f32[1,256], index: 10, kind: input, shape index: {}]
  %s11 = inlined_call_operand.vmem [shape: bf16[256,7], index: 11, kind: input, shape index: {}]
  %s12 = inlined_call_operand.vmem [shape: f32[1,7], index: 12, kind: input, shape index: {}]
  %s13 = inlined_call_operand.vmem [shape: f32[2,1,7], index: 13, kind: output, shape index: {}]
  %s14 = sld [smem:[#allocation0]]
  $region85: #{ac_forward.1} parent=0
    _
  %s16 = ssub.s32 1, %s14
  %s17 = scalar_select 0, %s16, %s14
  loop: start=0, step=1, limit=4
  $region2: #{ac_forward.1} parent=0 // loop_pre_header
    _
  $region3: #{ac_forward.1} parent=0 // loop_header
    %s19 = sphi 0, %s23
    %p20 = scmp.ge.s32.totalorder %s19, 4
    %s29 = sphi 0, %s31
    %s32 = sphi 0, %s29
    %s33 = sphi 0, %s32
    %s49 = sphi 0, %s33
    %s53 = sphi 0, %s53
    %s55 = sphi 0, %s53
    %s56 = sphi 0, %s55
    %s70 = sphi 0, %s56
    %s74 = sphi 0, %s74
    %s76 = sphi 0, %s74
    %s77 = sphi 0, %s76
    %s91 = sphi 0, %s77
    %s95 = sphi 0, %s95
    %s97 = sphi 0, %s95
    %s98 = sphi 0, %s97
    %s112 = sphi 0, %s98
    %s116 = sphi 0, %s116
    %s118 = sphi 0, %s116
    %s119 = sphi 0, %s118
    %s133 = sphi 0, %s119
    %s137 = sphi 0, %s137
    %s139 = sphi 0, %s137
    %s140 = sphi 0, %s139
    %s154 = sphi 0, %s140
    %s158 = sphi 0, %s158
    %s160 = sphi 0, %s158
    %s161 = sphi 0, %s160
    %s175 = sphi 0, %s161
    %s179 = sphi 0, %s179
    %s181 = sphi 0, %s179
    %s182 = sphi 0, %s181
    %s196 = sphi 0, %s182
    %s200 = sphi 0, %s200
    %s202 = sphi 0, %s200
    %s203 = sphi 0, %s202
    %s217 = sphi 0, %s203
    %s221 = sphi 0, %s221
    %s223 = sphi 0, %s221
    %s224 = sphi 0, %s223
    %s238 = sphi 0, %s224
    %s242 = sphi 0, %s242
    %s244 = sphi 0, %s242
    %s245 = sphi 0, %s244
    %s259 = sphi 0, %s245
    %s263 = sphi 0, %s263
    %s265 = sphi 0, %s263
    %s266 = sphi 0, %s265
    %s280 = sphi 0, %s266
    %s284 = sphi 0, %s284
    %s286 = sphi 0, %s284
    %s287 = sphi 0, %s286
    %s301 = sphi 0, %s287
    %s307 = sphi 0, %s309
    %s310 = sphi 0, %s307
    %s311 = sphi 0, %s310
    %s327 = sphi 0, %s311
  $region4: #{ac_forward.1} parent=0 // loop_header_branch
    %22 = sbr.rel (%p20) target = $region8
  $region5: #{ac_forward.1} parent=0 // loop_body
    %s24 = ssub.s32 %s19, 1
    %s25 = ssub.s32 %s19, 2
    %s26 = sadd.s32 %s19, 1
    %s27 = ssub.s32 %s19, %s26
    %p28 = scmp.eq.s32.totalorder %s27, 0
    %s30 = sadd.s32 %s29, 1
    %s31 = scalar_select %p28, %s29, %s30
    %p34 = pneg %p28
    %p35 = scmp.eq.s32.totalorder %s19, 1
    %p36 = por %p34, %p35
    %p37 = scmp.ne.s32.totalorder %s29, %s32
    %p38 = scmp.eq.s32.totalorder %s19, 0
    %p39 = por %p37, %p38
    %p40 = scmp.ne.s32.totalorder %s29, %s32
    %p41 = scmp.eq.s32.totalorder %s24, 1
    %p42 = por %p40, %p41
    %p43 = scmp.ne.s32.totalorder %s32, %s33
    %p44 = scmp.eq.s32.totalorder %s24, 0
    %p45 = por %p43, %p44
    %p46 = scmp.ne.s32.totalorder %s32, %s33
    %p47 = scmp.eq.s32.totalorder %s25, 1
    %p48 = por %p46, %p47
    %p50 = scmp.ne.s32.totalorder %s33, %s49
    %p51 = scmp.eq.s32.totalorder %s25, 0
    %p52 = por %p50, %p51
    %s54 = sadd.s32 %s53, 1
    %p57 = scmp.eq.s32.totalorder %s19, 1
    %p58 = scmp.ne.s32.totalorder %s53, %s55
    %p59 = scmp.eq.s32.totalorder %s19, 0
    %p60 = por %p58, %p59
    %p61 = scmp.ne.s32.totalorder %s53, %s55
    %p62 = scmp.eq.s32.totalorder %s24, 1
    %p63 = por %p61, %p62
    %p64 = scmp.ne.s32.totalorder %s55, %s56
    %p65 = scmp.eq.s32.totalorder %s24, 0
    %p66 = por %p64, %p65
    %p67 = scmp.ne.s32.totalorder %s55, %s56
    %p68 = scmp.eq.s32.totalorder %s25, 1
    %p69 = por %p67, %p68
    %p71 = scmp.ne.s32.totalorder %s56, %s70
    %p72 = scmp.eq.s32.totalorder %s25, 0
    %p73 = por %p71, %p72
    %s75 = sadd.s32 %s74, 1
    %p78 = scmp.eq.s32.totalorder %s19, 1
    %p79 = scmp.ne.s32.totalorder %s74, %s76
    %p80 = scmp.eq.s32.totalorder %s19, 0
    %p81 = por %p79, %p80
    %p82 = scmp.ne.s32.totalorder %s74, %s76
    %p83 = scmp.eq.s32.totalorder %s24, 1
    %p84 = por %p82, %p83
    %p85 = scmp.ne.s32.totalorder %s76, %s77
    %p86 = scmp.eq.s32.totalorder %s24, 0
    %p87 = por %p85, %p86
    %p88 = scmp.ne.s32.totalorder %s76, %s77
    %p89 = scmp.eq.s32.totalorder %s25, 1
    %p90 = por %p88, %p89
    %p92 = scmp.ne.s32.totalorder %s77, %s91
    %p93 = scmp.eq.s32.totalorder %s25, 0
    %p94 = por %p92, %p93
    %s96 = sadd.s32 %s95, 1
    %p99 = scmp.eq.s32.totalorder %s19, 1
    %p100 = scmp.ne.s32.totalorder %s95, %s97
    %p101 = scmp.eq.s32.totalorder %s19, 0
    %p102 = por %p100, %p101
    %p103 = scmp.ne.s32.totalorder %s95, %s97
    %p104 = scmp.eq.s32.totalorder %s24, 1
    %p105 = por %p103, %p104
    %p106 = scmp.ne.s32.totalorder %s97, %s98
    %p107 = scmp.eq.s32.totalorder %s24, 0
    %p108 = por %p106, %p107
    %p109 = scmp.ne.s32.totalorder %s97, %s98
    %p110 = scmp.eq.s32.totalorder %s25, 1
    %p111 = por %p109, %p110
    %p113 = scmp.ne.s32.totalorder %s98, %s112
    %p114 = scmp.eq.s32.totalorder %s25, 0
    %p115 = por %p113, %p114
    %s117 = sadd.s32 %s116, 1
    %p120 = scmp.eq.s32.totalorder %s19, 1
    %p121 = scmp.ne.s32.totalorder %s116, %s118
    %p122 = scmp.eq.s32.totalorder %s19, 0
    %p123 = por %p121, %p122
    %p124 = scmp.ne.s32.totalorder %s116, %s118
    %p125 = scmp.eq.s32.totalorder %s24, 1
    %p126 = por %p124, %p125
    %p127 = scmp.ne.s32.totalorder %s118, %s119
    %p128 = scmp.eq.s32.totalorder %s24, 0
    %p129 = por %p127, %p128
    %p130 = scmp.ne.s32.totalorder %s118, %s119
    %p131 = scmp.eq.s32.totalorder %s25, 1
    %p132 = por %p130, %p131
    %p134 = scmp.ne.s32.totalorder %s119, %s133
    %p135 = scmp.eq.s32.totalorder %s25, 0
    %p136 = por %p134, %p135
    %s138 = sadd.s32 %s137, 1
    %p141 = scmp.eq.s32.totalorder %s19, 1
    %p142 = scmp.ne.s32.totalorder %s137, %s139
    %p143 = scmp.eq.s32.totalorder %s19, 0
    %p144 = por %p142, %p143
    %p145 = scmp.ne.s32.totalorder %s137, %s139
    %p146 = scmp.eq.s32.totalorder %s24, 1
    %p147 = por %p145, %p146
    %p148 = scmp.ne.s32.totalorder %s139, %s140
    %p149 = scmp.eq.s32.totalorder %s24, 0
    %p150 = por %p148, %p149
    %p151 = scmp.ne.s32.totalorder %s139, %s140
    %p152 = scmp.eq.s32.totalorder %s25, 1
    %p153 = por %p151, %p152
    %p155 = scmp.ne.s32.totalorder %s140, %s154
    %p156 = scmp.eq.s32.totalorder %s25, 0
    %p157 = por %p155, %p156
    %s159 = sadd.s32 %s158, 1
    %p162 = scmp.eq.s32.totalorder %s19, 1
    %p163 = scmp.ne.s32.totalorder %s158, %s160
    %p164 = scmp.eq.s32.totalorder %s19, 0
    %p165 = por %p163, %p164
    %p166 = scmp.ne.s32.totalorder %s158, %s160
    %p167 = scmp.eq.s32.totalorder %s24, 1
    %p168 = por %p166, %p167
    %p169 = scmp.ne.s32.totalorder %s160, %s161
    %p170 = scmp.eq.s32.totalorder %s24, 0
    %p171 = por %p169, %p170
    %p172 = scmp.ne.s32.totalorder %s160, %s161
    %p173 = scmp.eq.s32.totalorder %s25, 1
    %p174 = por %p172, %p173
    %p176 = scmp.ne.s32.totalorder %s161, %s175
    %p177 = scmp.eq.s32.totalorder %s25, 0
    %p178 = por %p176, %p177
    %s180 = sadd.s32 %s179, 1
    %p183 = scmp.eq.s32.totalorder %s19, 1
    %p184 = scmp.ne.s32.totalorder %s179, %s181
    %p185 = scmp.eq.s32.totalorder %s19, 0
    %p186 = por %p184, %p185
    %p187 = scmp.ne.s32.totalorder %s179, %s181
    %p188 = scmp.eq.s32.totalorder %s24, 1
    %p189 = por %p187, %p188
    %p190 = scmp.ne.s32.totalorder %s181, %s182
    %p191 = scmp.eq.s32.totalorder %s24, 0
    %p192 = por %p190, %p191
    %p193 = scmp.ne.s32.totalorder %s181, %s182
    %p194 = scmp.eq.s32.totalorder %s25, 1
    %p195 = por %p193, %p194
    %p197 = scmp.ne.s32.totalorder %s182, %s196
    %p198 = scmp.eq.s32.totalorder %s25, 0
    %p199 = por %p197, %p198
    %s201 = sadd.s32 %s200, 1
    %p204 = scmp.eq.s32.totalorder %s19, 1
    %p205 = scmp.ne.s32.totalorder %s200, %s202
    %p206 = scmp.eq.s32.totalorder %s19, 0
    %p207 = por %p205, %p206
    %p208 = scmp.ne.s32.totalorder %s200, %s202
    %p209 = scmp.eq.s32.totalorder %s24, 1
    %p210 = por %p208, %p209
    %p211 = scmp.ne.s32.totalorder %s202, %s203
    %p212 = scmp.eq.s32.totalorder %s24, 0
    %p213 = por %p211, %p212
    %p214 = scmp.ne.s32.totalorder %s202, %s203
    %p215 = scmp.eq.s32.totalorder %s25, 1
    %p216 = por %p214, %p215
    %p218 = scmp.ne.s32.totalorder %s203, %s217
    %p219 = scmp.eq.s32.totalorder %s25, 0
    %p220 = por %p218, %p219
    %s222 = sadd.s32 %s221, 1
    %p225 = scmp.eq.s32.totalorder %s19, 1
    %p226 = scmp.ne.s32.totalorder %s221, %s223
    %p227 = scmp.eq.s32.totalorder %s19, 0
    %p228 = por %p226, %p227
    %p229 = scmp.ne.s32.totalorder %s221, %s223
    %p230 = scmp.eq.s32.totalorder %s24, 1
    %p231 = por %p229, %p230
    %p232 = scmp.ne.s32.totalorder %s223, %s224
    %p233 = scmp.eq.s32.totalorder %s24, 0
    %p234 = por %p232, %p233
    %p235 = scmp.ne.s32.totalorder %s223, %s224
    %p236 = scmp.eq.s32.totalorder %s25, 1
    %p237 = por %p235, %p236
    %p239 = scmp.ne.s32.totalorder %s224, %s238
    %p240 = scmp.eq.s32.totalorder %s25, 0
    %p241 = por %p239, %p240
    %s243 = sadd.s32 %s242, 1
    %p246 = scmp.eq.s32.totalorder %s19, 1
    %p247 = scmp.ne.s32.totalorder %s242, %s244
    %p248 = scmp.eq.s32.totalorder %s19, 0
    %p249 = por %p247, %p248
    %p250 = scmp.ne.s32.totalorder %s242, %s244
    %p251 = scmp.eq.s32.totalorder %s24, 1
    %p252 = por %p250, %p251
    %p253 = scmp.ne.s32.totalorder %s244, %s245
    %p254 = scmp.eq.s32.totalorder %s24, 0
    %p255 = por %p253, %p254
    %p256 = scmp.ne.s32.totalorder %s244, %s245
    %p257 = scmp.eq.s32.totalorder %s25, 1
    %p258 = por %p256, %p257
    %p260 = scmp.ne.s32.totalorder %s245, %s259
    %p261 = scmp.eq.s32.totalorder %s25, 0
    %p262 = por %p260, %p261
    %s264 = sadd.s32 %s263, 1
    %p267 = scmp.eq.s32.totalorder %s19, 1
    %p268 = scmp.ne.s32.totalorder %s263, %s265
    %p269 = scmp.eq.s32.totalorder %s19, 0
    %p270 = por %p268, %p269
    %p271 = scmp.ne.s32.totalorder %s263, %s265
    %p272 = scmp.eq.s32.totalorder %s24, 1
    %p273 = por %p271, %p272
    %p274 = scmp.ne.s32.totalorder %s265, %s266
    %p275 = scmp.eq.s32.totalorder %s24, 0
    %p276 = por %p274, %p275
    %p277 = scmp.ne.s32.totalorder %s265, %s266
    %p278 = scmp.eq.s32.totalorder %s25, 1
    %p279 = por %p277, %p278
    %p281 = scmp.ne.s32.totalorder %s266, %s280
    %p282 = scmp.eq.s32.totalorder %s25, 0
    %p283 = por %p281, %p282
    %s285 = sadd.s32 %s284, 1
    %p288 = scmp.eq.s32.totalorder %s19, 1
    %p289 = scmp.ne.s32.totalorder %s284, %s286
    %p290 = scmp.eq.s32.totalorder %s19, 0
    %p291 = por %p289, %p290
    %p292 = scmp.ne.s32.totalorder %s284, %s286
    %p293 = scmp.eq.s32.totalorder %s24, 1
    %p294 = por %p292, %p293
    %p295 = scmp.ne.s32.totalorder %s286, %s287
    %p296 = scmp.eq.s32.totalorder %s24, 0
    %p297 = por %p295, %p296
    %p298 = scmp.ne.s32.totalorder %s286, %s287
    %p299 = scmp.eq.s32.totalorder %s25, 1
    %p300 = por %p298, %p299
    %p302 = scmp.ne.s32.totalorder %s287, %s301
    %p303 = scmp.eq.s32.totalorder %s25, 0
    %p304 = por %p302, %p303
    %s305 = ssub.s32 %s19, %s26
    %p306 = scmp.eq.s32.totalorder %s305, 0
    %s308 = sadd.s32 %s307, 1
    %s309 = scalar_select %p306, %s307, %s308
    %p312 = pneg %p306
    %p313 = scmp.eq.s32.totalorder %s19, 1
    %p314 = por %p312, %p313
    %p315 = scmp.ne.s32.totalorder %s307, %s310
    %p316 = scmp.eq.s32.totalorder %s19, 0
    %p317 = por %p315, %p316
    %p318 = scmp.ne.s32.totalorder %s307, %s310
    %p319 = scmp.eq.s32.totalorder %s24, 1
    %p320 = por %p318, %p319
    %p321 = scmp.ne.s32.totalorder %s310, %s311
    %p322 = scmp.eq.s32.totalorder %s24, 0
    %p323 = por %p321, %p322
    %p324 = scmp.ne.s32.totalorder %s310, %s311
    %p325 = scmp.eq.s32.totalorder %s25, 1
    %p326 = por %p324, %p325
    %p328 = scmp.ne.s32.totalorder %s311, %s327
    %p329 = scmp.eq.s32.totalorder %s25, 0
    %p330 = por %p328, %p329
    %p331 = scmp.le.s32.totalorder 1, %s19
    %p332 = scmp.lt.s32.totalorder %s19, 3
    %p333 = pnand %p331, %p332
    %p334 = pneg %p333
    // Predicated region
    $region9: #{ac_forward.1} parent=5 // pred_check
      _
    $region10: #{ac_forward.1} parent=5 // pred_check_branch
      %336 = sbr.rel (%p333) target = $region12
    $region11: #{ac_forward.1} parent=5 // pred_region
      %s337 = ssub.s32 %s19, 1
      // Predicated region
      $region13: #{ac_forward.1} parent=11 // pred_check
        %p338 = pneg %p66
      $region14: #{ac_forward.1} parent=11 // pred_check_branch
        %340 = sbr.rel (%p338) target = $region16
      $region15: #{ac_forward.1} parent=11 // pred_region
        _
      $region16: #{ac_forward.1} parent=11 // pred_fallthru
        _
      // Predicated region
      $region17: #{ac_forward.1} parent=11 // pred_check
        %p341 = pneg %p87
      $region18: #{ac_forward.1} parent=11 // pred_check_branch
        %343 = sbr.rel (%p341) target = $region20
      $region19: #{ac_forward.1} parent=11 // pred_region
        _
      $region20: #{ac_forward.1} parent=11 // pred_fallthru
        _
      // Predicated region
      $region21: #{ac_forward.1} parent=11 // pred_check
        %p344 = pneg %p108
      $region22: #{ac_forward.1} parent=11 // pred_check_branch
        %346 = sbr.rel (%p344) target = $region24
      $region23: #{ac_forward.1} parent=11 // pred_region
        _
      $region24: #{ac_forward.1} parent=11 // pred_fallthru
        _
      // Predicated region
      $region25: #{ac_forward.1} parent=11 // pred_check
        %p347 = pneg %p129
      $region26: #{ac_forward.1} parent=11 // pred_check_branch
        %349 = sbr.rel (%p347) target = $region28
      $region27: #{ac_forward.1} parent=11 // pred_region
        _
      $region28: #{ac_forward.1} parent=11 // pred_fallthru
        _
      // Predicated region
      $region29: #{ac_forward.1} parent=11 // pred_check
        %p350 = pneg %p150
      $region30: #{ac_forward.1} parent=11 // pred_check_branch
        %352 = sbr.rel (%p350) target = $region32
      $region31: #{ac_forward.1} parent=11 // pred_region
        _
      $region32: #{ac_forward.1} parent=11 // pred_fallthru
        _
      // Predicated region
      $region33: #{ac_forward.1} parent=11 // pred_check
        %p353 = pneg %p171
      $region34: #{ac_forward.1} parent=11 // pred_check_branch
        %355 = sbr.rel (%p353) target = $region36
      $region35: #{ac_forward.1} parent=11 // pred_region
        _
      $region36: #{ac_forward.1} parent=11 // pred_fallthru
        _
      // Predicated region
      $region37: #{ac_forward.1} parent=11 // pred_check
        %p356 = pneg %p192
      $region38: #{ac_forward.1} parent=11 // pred_check_branch
        %358 = sbr.rel (%p356) target = $region40
      $region39: #{ac_forward.1} parent=11 // pred_region
        _
      $region40: #{ac_forward.1} parent=11 // pred_fallthru
        _
      // Predicated region
      $region41: #{ac_forward.1} parent=11 // pred_check
        %p359 = pneg %p213
      $region42: #{ac_forward.1} parent=11 // pred_check_branch
        %361 = sbr.rel (%p359) target = $region44
      $region43: #{ac_forward.1} parent=11 // pred_region
        _
      $region44: #{ac_forward.1} parent=11 // pred_fallthru
        _
      // Predicated region
      $region45: #{ac_forward.1} parent=11 // pred_check
        %p362 = pneg %p234
      $region46: #{ac_forward.1} parent=11 // pred_check_branch
        %364 = sbr.rel (%p362) target = $region48
      $region47: #{ac_forward.1} parent=11 // pred_region
        _
      $region48: #{ac_forward.1} parent=11 // pred_fallthru
        _
      // Predicated region
      $region49: #{ac_forward.1} parent=11 // pred_check
        %p365 = pneg %p255
      $region50: #{ac_forward.1} parent=11 // pred_check_branch
        %367 = sbr.rel (%p365) target = $region52
      $region51: #{ac_forward.1} parent=11 // pred_region
        _
      $region52: #{ac_forward.1} parent=11 // pred_fallthru
        _
      // Predicated region
      $region53: #{ac_forward.1} parent=11 // pred_check
        %p368 = pneg %p276
      $region54: #{ac_forward.1} parent=11 // pred_check_branch
        %370 = sbr.rel (%p368) target = $region56
      $region55: #{ac_forward.1} parent=11 // pred_region
        _
      $region56: #{ac_forward.1} parent=11 // pred_fallthru
        _
      // Predicated region
      $region57: #{ac_forward.1} parent=11 // pred_check
        %p371 = pneg %p297
      $region58: #{ac_forward.1} parent=11 // pred_check_branch
        %373 = sbr.rel (%p371) target = $region60
      $region59: #{ac_forward.1} parent=11 // pred_region
        _
      $region60: #{ac_forward.1} parent=11 // pred_fallthru
        _
    $region12: #{ac_forward.1} parent=5 // pred_fallthru
      _
    %p374 = scmp.lt.s32.totalorder %s19, 2
    // Predicated region
    $region61: #{ac_forward.1} parent=5 // pred_check
      %p375 = pneg %p374
    $region62: #{ac_forward.1} parent=5 // pred_check_branch
      %377 = sbr.rel (%p375) target = $region64
    $region63: #{ac_forward.1} parent=5 // pred_region
      // Predicated region
      $region65: #{ac_forward.1} parent=63 // pred_check
        %p378 = pneg %p39
      $region66: #{ac_forward.1} parent=63 // pred_check_branch
        %380 = sbr.rel (%p378) target = $region68
      $region67: #{ac_forward.1} parent=63 // pred_region
        %p381 = scmp.lt.s32.totalorder %s19, 1
        %s382 = scalar_select %p381, %s19, 1
        %s383 = smul.addr %s382, 16
        %s384 = smul.addr %s383, 4
        %s385 = scalar_lea.vmem %s0, %s384
      $region68: #{ac_forward.1} parent=63 // pred_fallthru
        _
    $region64: #{ac_forward.1} parent=5 // pred_fallthru
      _
    %p386 = scmp.le.s32.totalorder 1, %s19
    %p387 = scmp.lt.s32.totalorder %s19, 3
    %p388 = pnand %p386, %p387
    %p389 = pneg %p388
    // Predicated region
    $region69: #{ac_forward.1} parent=5 // pred_check
      _
    $region70: #{ac_forward.1} parent=5 // pred_check_branch
      %391 = sbr.rel (%p388) target = $region72
    $region71: #{ac_forward.1} parent=5 // pred_region
      %s392 = ssub.s32 %s19, 1
      %p393 = scmp.lt.s32.totalorder %s24, 1
      %s394 = scalar_select %p393, %s24, 1
      %s395 = smul.addr %s394, 16
      %s396 = smul.addr %s395, 4
      %s397 = scalar_lea.vmem %s0, %s396
      %p398 = pneg %p45
      %p399 = pneg %p42
      %p400 = pneg %p66
      %p401 = pneg %p63
      %p402 = pneg %p87
      %p403 = pneg %p84
      %p404 = pneg %p108
      %p405 = pneg %p105
      %p406 = pneg %p129
      %p407 = pneg %p126
      %p408 = pneg %p150
      %p409 = pneg %p147
      %p410 = pneg %p171
      %p411 = pneg %p168
      %p412 = pneg %p192
      %p413 = pneg %p189
      %p414 = pneg %p213
      %p415 = pneg %p210
      %p416 = pneg %p234
      %p417 = pneg %p231
      %p418 = pneg %p255
      %p419 = pneg %p252
      %p420 = pneg %p276
      %p421 = pneg %p273
      %p422 = pneg %p297
      %p423 = pneg %p294
      %p424 = pneg %p323
      %p425 = pneg %p320
      %p426 = scmp.lt.s32.totalorder %s24, 1
      %s427 = scalar_select %p426, %s24, 1
      %s428 = scalar_lea.vmem %s13, %s427
      %p429 = scmp.lt.s32.totalorder %s24, 1
      %s430 = scalar_select %p429, %s24, 1
      %s431 = smul.addr %s430, 16
      %s432 = smul.addr %s431, 4
      %s433 = scalar_lea.vmem %s0, %s432
      %p434 = scmp.lt.s32.totalorder %s24, 1
      %s435 = scalar_select %p434, %s24, 1
      %s436 = scalar_lea.vmem %s13, %s435
      %v438 = vld [vmem:[%s433] sm:$0xff]
      %v439 = vld [vmem:[%s433 + $0x8] sm:$0xff]
      %v440 = vld [vmem:[%s433 + $0x10] sm:$0xff]
      %v441 = vld [vmem:[%s433 + $0x18] sm:$0xff]
      %v442 = vld [vmem:[%s433 + $0x20] sm:$0xff]
      %v443 = vld [vmem:[%s433 + $0x28] sm:$0xff]
      %v444 = vld [vmem:[%s433 + $0x30] sm:$0xff]
      %v445 = vld [vmem:[%s433 + $0x38] sm:$0xff]
      %v446 = vld [vmem:[%s1] sm:$0xf]
      %v447 = vld [vmem:[%s1 + $0x4] sm:$0xf]
      %v448 = vld [vmem:[%s1 + $0x8] sm:$0xf]
      %v449 = vld [vmem:[%s1 + $0xc] sm:$0xf]
      %v450 = vld [vmem:[%s1 + $0x10] sm:$0xf]
      %v451 = vld [vmem:[%s1 + $0x14] sm:$0xf]
      %v452 = vld [vmem:[%s1 + $0x18] sm:$0xf]
      %v453 = vld [vmem:[%s1 + $0x1c] sm:$0xf]
      %v454 = vld [vmem:[%s1 + $0x20] sm:$0xf]
      %v455 = vld [vmem:[%s1 + $0x24] sm:$0xf]
      %v456 = vld [vmem:[%s1 + $0x28] sm:$0xf]
      %v457 = vld [vmem:[%s1 + $0x2c] sm:$0xf]
      %v458 = vld [vmem:[%s1 + $0x30] sm:$0xf]
      %v459 = vld [vmem:[%s1 + $0x34] sm:$0xf]
      %v460 = vld [vmem:[%s1 + $0x38] sm:$0xf]
      %v461 = vld [vmem:[%s1 + $0x3c] sm:$0xf]
      %v462 = vld [vmem:[%s1 + $0x40] sm:$0xf]
      %v463 = vld [vmem:[%s1 + $0x44] sm:$0xf]
      %v464 = vld [vmem:[%s1 + $0x48] sm:$0xf]
      %v465 = vld [vmem:[%s1 + $0x4c] sm:$0xf]
      %v466 = vld [vmem:[%s1 + $0x50] sm:$0xf]
      %v467 = vld [vmem:[%s1 + $0x54] sm:$0xf]
      %v468 = vld [vmem:[%s1 + $0x58] sm:$0xf]
      %v469 = vld [vmem:[%s1 + $0x5c] sm:$0xf]
      %v470 = vld [vmem:[%s1 + $0x60] sm:$0xf]
      %v471 = vld [vmem:[%s1 + $0x64] sm:$0xf]
      %v472 = vld [vmem:[%s1 + $0x68] sm:$0xf]
      %v473 = vld [vmem:[%s1 + $0x6c] sm:$0xf]
      %v474 = vld [vmem:[%s1 + $0x70] sm:$0xf]
      %v475 = vld [vmem:[%s1 + $0x74] sm:$0xf]
      %v476 = vld [vmem:[%s1 + $0x78] sm:$0xf]
      %v477 = vld [vmem:[%s1 + $0x7c] sm:$0xf]
      %v478 = vld [vmem:[%s2] sm:$0x1]
      %v480 = vlaneseq
      %v481 = vshrl.u32 %v480, 7
      %v482 = vsub.s32 0, %v481
      %v483 = vrot.slane %v478, %v482
      %v493 = vunpack.c.l.b16 %v438
      %v494 = vunpack.c.h.b16 %v438
      %v495 = vunpack.c.l.b16 %v439
      %v496 = vunpack.c.h.b16 %v439
      %v497 = vunpack.c.l.b16 %v440
      %v498 = vunpack.c.h.b16 %v440
      %v499 = vunpack.c.l.b16 %v441
      %v500 = vunpack.c.h.b16 %v441
      %v501 = vunpack.c.l.b16 %v442
      %v502 = vunpack.c.h.b16 %v442
      %v503 = vunpack.c.l.b16 %v443
      %v504 = vunpack.c.h.b16 %v443
      %v505 = vunpack.c.l.b16 %v444
      %v506 = vunpack.c.h.b16 %v444
      %v507 = vunpack.c.l.b16 %v445
      %v508 = vunpack.c.h.b16 %v445
      %v509 = vpack.c.b16 %v495, %v493
      %v510 = vpack.c.b16 %v496, %v494
      %v511 = vpack.c.b16 %v499, %v497
      %v512 = vpack.c.b16 %v500, %v498
      %v513 = vpack.c.b16 %v503, %v501
      %v514 = vpack.c.b16 %v504, %v502
      %v515 = vpack.c.b16 %v507, %v505
      %v516 = vpack.c.b16 %v508, %v506
      %v557 = vunpack.c.l.b16 %v446
      %v558 = vunpack.c.l.b16 %v447
      %v559 = vunpack.c.l.b16 %v448
      %v560 = vunpack.c.l.b16 %v449
      %v561 = vunpack.c.l.b16 %v450
      %v562 = vunpack.c.l.b16 %v451
      %v563 = vunpack.c.l.b16 %v452
      %v564 = vunpack.c.l.b16 %v453
      %v565 = vunpack.c.l.b16 %v454
      %v566 = vunpack.c.l.b16 %v455
      %v567 = vunpack.c.l.b16 %v456
      %v568 = vunpack.c.l.b16 %v457
      %v569 = vunpack.c.l.b16 %v458
      %v570 = vunpack.c.l.b16 %v459
      %v571 = vunpack.c.l.b16 %v460
      %v572 = vunpack.c.l.b16 %v461
      %v573 = vunpack.c.l.b16 %v462
      %v574 = vunpack.c.l.b16 %v463
      %v575 = vunpack.c.l.b16 %v464
      %v576 = vunpack.c.l.b16 %v465
      %v577 = vunpack.c.l.b16 %v466
      %v578 = vunpack.c.l.b16 %v467
      %v579 = vunpack.c.l.b16 %v468
      %v580 = vunpack.c.l.b16 %v469
      %v581 = vunpack.c.l.b16 %v470
      %v582 = vunpack.c.l.b16 %v471
      %v583 = vunpack.c.l.b16 %v472
      %v584 = vunpack.c.l.b16 %v473
      %v585 = vunpack.c.l.b16 %v474
      %v586 = vunpack.c.l.b16 %v475
      %v587 = vunpack.c.l.b16 %v476
      %v588 = vunpack.c.l.b16 %v477
      %v589 = vpack.c.b16 %v558, %v557
      %v590 = vpack.c.b16 %v560, %v559
      %v591 = vpack.c.b16 %v562, %v561
      %v592 = vpack.c.b16 %v564, %v563
      %v593 = vpack.c.b16 %v566, %v565
      %v594 = vpack.c.b16 %v568, %v567
      %v595 = vpack.c.b16 %v570, %v569
      %v596 = vpack.c.b16 %v572, %v571
      %v597 = vpack.c.b16 %v574, %v573
      %v598 = vpack.c.b16 %v576, %v575
      %v599 = vpack.c.b16 %v578, %v577
      %v600 = vpack.c.b16 %v580, %v579
      %v601 = vpack.c.b16 %v582, %v581
      %v602 = vpack.c.b16 %v584, %v583
      %v603 = vpack.c.b16 %v586, %v585
      %v604 = vpack.c.b16 %v588, %v587
      %621 = vmatprep.subr.bf16.mxu0 0
      %622 = vmatpush1.bf16.msra.mxu0 %v589
      %623 = vmatprep.subr.bf16.mxu0 0
      %624 = vmatpush1.bf16.msra.mxu0 %v590
      %625 = vmatprep.subr.bf16.mxu0 0
      %626 = vmatpush1.bf16.msra.mxu0 %v591
      %627 = vmatprep.subr.bf16.mxu0 0
      %628 = vmatpush1.bf16.msra.mxu0 %v592
      %629 = vmatprep.subr.bf16.mxu0 0
      %630 = vmatpush1.bf16.msra.mxu0 %v593
      %631 = vmatprep.subr.bf16.mxu0 0
      %632 = vmatpush1.bf16.msra.mxu0 %v594
      %633 = vmatprep.subr.bf16.mxu0 0
      %634 = vmatpush1.bf16.msra.mxu0 %v595
      %635 = vmatprep.subr.bf16.mxu0 0
      %636 = vmatpush1.bf16.msra.mxu0 %v596
      %637 = vmatprep.subr.bf16.mxu0 0
      %638 = vmatpush1.bf16.msra.mxu0 %v597
      %639 = vmatprep.subr.bf16.mxu0 0
      %640 = vmatpush1.bf16.msra.mxu0 %v598
      %641 = vmatprep.subr.bf16.mxu0 0
      %642 = vmatpush1.bf16.msra.mxu0 %v599
      %643 = vmatprep.subr.bf16.mxu0 0
      %644 = vmatpush1.bf16.msra.mxu0 %v600
      %645 = vmatprep.subr.bf16.mxu0 0
      %646 = vmatpush1.bf16.msra.mxu0 %v601
      %647 = vmatprep.subr.bf16.mxu0 0
      %648 = vmatpush1.bf16.msra.mxu0 %v602
      %649 = vmatprep.subr.bf16.mxu0 0
      %650 = vmatpush1.bf16.msra.mxu0 %v603
      %651 = vmatprep.subr.bf16.mxu0 0
      %652 = vmatpush1.bf16.msra.mxu0 %v604
      %653 = vmatprep.mubr.bf16.mxu0 %v510
      %654 = vmatmul.mubr.bf16.gmra.mrb[0].mxu0 %v509
      %v655 = vpop.f32.mrb[0].mxu0
      %v656 = vadd.f32 %v483, %v655
      %v657 = vpop.f32.mrb[0].mxu0
      %v658 = vpop.f32.mrb[0].mxu0
      %v659 = vadd.f32 %v483, %v658
      %v660 = vpop.f32.mrb[0].mxu0
      %661 = vmatprep.mubr.bf16.mxu0 %v512
      %662 = vmatmul.mubr.bf16.gmra.mrb[0].mxu0 %v511
      %v663 = vpop.f32.mrb[0].mxu0
      %v664 = vadd.f32 %v483, %v663
      %v665 = vpop.f32.mrb[0].mxu0
      %v666 = vpop.f32.mrb[0].mxu0
      %v667 = vadd.f32 %v483, %v666
      %v668 = vpop.f32.mrb[0].mxu0
      %669 = vmatprep.mubr.bf16.mxu0 %v514
      %670 = vmatmul.mubr.bf16.gmra.mrb[0].mxu0 %v513
      %v671 = vpop.f32.mrb[0].mxu0
      %v672 = vadd.f32 %v483, %v671
      %v673 = vpop.f32.mrb[0].mxu0
      %v674 = vpop.f32.mrb[0].mxu0
      %v675 = vadd.f32 %v483, %v674
      %v676 = vpop.f32.mrb[0].mxu0
      %677 = vmatprep.mubr.bf16.mxu0 %v516
      %678 = vmatmul.mubr.bf16.gmra.mrb[0].mxu0 %v515
      %v679 = vpop.f32.mrb[0].mxu0
      %v680 = vadd.f32 %v483, %v679
      %v681 = vpop.f32.mrb[0].mxu0
      %v682 = vpop.f32.mrb[0].mxu0
      %v683 = vadd.f32 %v483, %v682
      %v684 = vpop.f32.mrb[0].mxu0
      %685 = vdwg.mxu0
      %vm686 = vcmp.gt.f32.partialorder %v656, 0.0
      %vm687 = vcmp.gt.f32.partialorder %v659, 0.0
      %vm688 = vcmp.gt.f32.partialorder %v664, 0.0
      %vm689 = vcmp.gt.f32.partialorder %v667, 0.0
      %vm690 = vcmp.gt.f32.partialorder %v672, 0.0
      %vm691 = vcmp.gt.f32.partialorder %v675, 0.0
      %vm692 = vcmp.gt.f32.partialorder %v680, 0.0
      %vm693 = vcmp.gt.f32.partialorder %v683, 0.0
      %v694 = vmin.f32 %v656, 0.0
      %v695 = vmin.f32 %v659, 0.0
      %v696 = vmin.f32 %v664, 0.0
      %v697 = vmin.f32 %v667, 0.0
      %v698 = vmin.f32 %v672, 0.0
      %v699 = vmin.f32 %v675, 0.0
      %v700 = vmin.f32 %v680, 0.0
      %v701 = vmin.f32 %v683, 0.0
      %v702 = vmul.f32 %v694, 1.442695
      %v703 = vpow.pop %v702
      %v704 = vmul.f32 %v695, 1.442695
      %v705 = vpow.pop %v704
      %v706 = vmul.f32 %v696, 1.442695
      %v707 = vpow.pop %v706
      %v708 = vmul.f32 %v697, 1.442695
      %v709 = vpow.pop %v708
      %v710 = vmul.f32 %v698, 1.442695
      %v711 = vpow.pop %v710
      %v712 = vmul.f32 %v699, 1.442695
      %v713 = vpow.pop %v712
      %v714 = vmul.f32 %v700, 1.442695
      %v715 = vpow.pop %v714
      %v716 = vmul.f32 %v701, 1.442695
      %v717 = vpow.pop %v716
      %v718 = vsub.f32 %v703, 1.0
      %v719 = vsub.f32 %v705, 1.0
      %v720 = vsub.f32 %v707, 1.0
      %v721 = vsub.f32 %v709, 1.0
      %v722 = vsub.f32 %v711, 1.0
      %v723 = vsub.f32 %v713, 1.0
      %v724 = vsub.f32 %v715, 1.0
      %v725 = vsub.f32 %v717, 1.0
      %v726 = vsel %vm686, %v656, %v718
      %v727 = vsel %vm687, %v659, %v719
      %v728 = vsel %vm688, %v664, %v720
      %v729 = vsel %vm689, %v667, %v721
      %v730 = vsel %vm690, %v672, %v722
      %v731 = vsel %vm691, %v675, %v723
      %v732 = vsel %vm692, %v680, %v724
      %v733 = vsel %vm693, %v683, %v725
      %v734 = vpack.c.bf16 %v727, %v726
      %v735 = vpack.c.bf16 %v729, %v728
      %v736 = vpack.c.bf16 %v731, %v730
      %v737 = vpack.c.bf16 %v733, %v732
      %v738 = vld [vmem:[%s3] sm:$0xf]
      %v739 = vld [vmem:[%s3 + $0x4] sm:$0xf]
      %v740 = vld [vmem:[%s3 + $0x8] sm:$0xf]
      %v741 = vld [vmem:[%s3 + $0xc] sm:$0xf]
      %v742 = vld [vmem:[%s3 + $0x10] sm:$0xf]
      %v743 = vld [vmem:[%s3 + $0x14] sm:$0xf]
      %v744 = vld [vmem:[%s3 + $0x18] sm:$0xf]
      %v745 = vld [vmem:[%s3 + $0x1c] sm:$0xf]
      %v746 = vld [vmem:[%s3 + $0x20] sm:$0xf]
      %v747 = vld [vmem:[%s3 + $0x24] sm:$0xf]
      %v748 = vld [vmem:[%s3 + $0x28] sm:$0xf]
      %v749 = vld [vmem:[%s3 + $0x2c] sm:$0xf]
      %v750 = vld [vmem:[%s3 + $0x30] sm:$0xf]
      %v751 = vld [vmem:[%s3 + $0x34] sm:$0xf]
      %v752 = vld [vmem:[%s3 + $0x38] sm:$0xf]
      %v753 = vld [vmem:[%s3 + $0x3c] sm:$0xf]
      %v754 = vld [vmem:[%s3 + $0x40] sm:$0xf]
      %v755 = vld [vmem:[%s3 + $0x44] sm:$0xf]
      %v756 = vld [vmem:[%s3 + $0x48] sm:$0xf]
      %v757 = vld [vmem:[%s3 + $0x4c] sm:$0xf]
      %v758 = vld [vmem:[%s3 + $0x50] sm:$0xf]
      %v759 = vld [vmem:[%s3 + $0x54] sm:$0xf]
      %v760 = vld [vmem:[%s3 + $0x58] sm:$0xf]
      %v761 = vld [vmem:[%s3 + $0x5c] sm:$0xf]
      %v762 = vld [vmem:[%s3 + $0x60] sm:$0xf]
      %v763 = vld [vmem:[%s3 + $0x64] sm:$0xf]
      %v764 = vld [vmem:[%s3 + $0x68] sm:$0xf]
      %v765 = vld [vmem:[%s3 + $0x6c] sm:$0xf]
      %v766 = vld [vmem:[%s3 + $0x70] sm:$0xf]
      %v767 = vld [vmem:[%s3 + $0x74] sm:$0xf]
      %v768 = vld [vmem:[%s3 + $0x78] sm:$0xf]
      %v769 = vld [vmem:[%s3 + $0x7c] sm:$0xf]
      %v802 = vunpack.c.l.b16 %v738
      %v803 = vunpack.c.l.b16 %v739
      %v804 = vunpack.c.l.b16 %v740
      %v805 = vunpack.c.l.b16 %v741
      %v806 = vunpack.c.l.b16 %v742
      %v807 = vunpack.c.l.b16 %v743
      %v808 = vunpack.c.l.b16 %v744
      %v809 = vunpack.c.l.b16 %v745
      %v810 = vunpack.c.l.b16 %v746
      %v811 = vunpack.c.l.b16 %v747
      %v812 = vunpack.c.l.b16 %v748
      %v813 = vunpack.c.l.b16 %v749
      %v814 = vunpack.c.l.b16 %v750
      %v815 = vunpack.c.l.b16 %v751
      %v816 = vunpack.c.l.b16 %v752
      %v817 = vunpack.c.l.b16 %v753
      %v818 = vunpack.c.l.b16 %v754
      %v819 = vunpack.c.l.b16 %v755
      %v820 = vunpack.c.l.b16 %v756
      %v821 = vunpack.c.l.b16 %v757
      %v822 = vunpack.c.l.b16 %v758
      %v823 = vunpack.c.l.b16 %v759
      %v824 = vunpack.c.l.b16 %v760
      %v825 = vunpack.c.l.b16 %v761
      %v826 = vunpack.c.l.b16 %v762
      %v827 = vunpack.c.l.b16 %v763
      %v828 = vunpack.c.l.b16 %v764
      %v829 = vunpack.c.l.b16 %v765
      %v830 = vunpack.c.l.b16 %v766
      %v831 = vunpack.c.l.b16 %v767
      %v832 = vunpack.c.l.b16 %v768
      %v833 = vunpack.c.l.b16 %v769
      %v834 = vpack.c.b16 %v803, %v802
      %v835 = vpack.c.b16 %v805, %v804
      %v836 = vpack.c.b16 %v807, %v806
      %v837 = vpack.c.b16 %v809, %v808
      %v838 = vpack.c.b16 %v811, %v810
      %v839 = vpack.c.b16 %v813, %v812
      %v840 = vpack.c.b16 %v815, %v814
      %v841 = vpack.c.b16 %v817, %v816
      %v842 = vpack.c.b16 %v819, %v818
      %v843 = vpack.c.b16 %v821, %v820
      %v844 = vpack.c.b16 %v823, %v822
      %v845 = vpack.c.b16 %v825, %v824
      %v846 = vpack.c.b16 %v827, %v826
      %v847 = vpack.c.b16 %v829, %v828
      %v848 = vpack.c.b16 %v831, %v830
      %v849 = vpack.c.b16 %v833, %v832
      %vm850 = vcmask 523264
      %v852 = vsel %vm850, %v834, 0
      %v855 = vsel %vm850, %v835, 0
      %v858 = vsel %vm850, %v836, 0
      %v861 = vsel %vm850, %v837, 0
      %v864 = vsel %vm850, %v838, 0
      %v867 = vsel %vm850, %v839, 0
      %v870 = vsel %vm850, %v840, 0
      %v873 = vsel %vm850, %v841, 0
      %v876 = vsel %vm850, %v842, 0
      %v879 = vsel %vm850, %v843, 0
      %v882 = vsel %vm850, %v844, 0
      %v885 = vsel %vm850, %v845, 0
      %v888 = vsel %vm850, %v846, 0
      %v891 = vsel %vm850, %v847, 0
      %v894 = vsel %vm850, %v848, 0
      %v897 = vsel %vm850, %v849, 0
      %899 = vmatprep.subr.bf16.mxu0 0
      %900 = vmatpush1.bf16.msra.mxu0 %v734
      %901 = vmatprep.subr.bf16.mxu0 0
      %902 = vmatpush1.bf16.msra.mxu0 %v735
      %903 = vmatprep.subr.bf16.mxu0 0
      %904 = vmatpush1.bf16.msra.mxu0 %v736
      %905 = vmatprep.subr.bf16.mxu0 0
      %906 = vmatpush1.bf16.msra.mxu0 %v737
      %907 = vmatprep.subr.bf16.mxu0 0
      %908 = vmatpush1.bf16.msra.mxu0 0
      %909 = vmatprep.subr.bf16.mxu0 0
      %910 = vmatpush1.bf16.msra.mxu0 0
      %911 = vmatprep.subr.bf16.mxu0 0
      %912 = vmatpush1.bf16.msra.mxu0 0
      %913 = vmatprep.subr.bf16.mxu0 0
      %914 = vmatpush1.bf16.msra.mxu0 0
      %915 = vmatprep.subr.bf16.mxu0 0
      %916 = vmatpush1.bf16.msra.mxu0 0
      %917 = vmatprep.subr.bf16.mxu0 0
      %918 = vmatpush1.bf16.msra.mxu0 0
      %919 = vmatprep.subr.bf16.mxu0 0
      %920 = vmatpush1.bf16.msra.mxu0 0
      %921 = vmatprep.subr.bf16.mxu0 0
      %922 = vmatpush1.bf16.msra.mxu0 0
      %923 = vmatprep.subr.bf16.mxu0 0
      %924 = vmatpush1.bf16.msra.mxu0 0
      %925 = vmatprep.subr.bf16.mxu0 0
      %926 = vmatpush1.bf16.msra.mxu0 0
      %927 = vmatprep.subr.bf16.mxu0 0
      %928 = vmatpush1.bf16.msra.mxu0 0
      %929 = vmatprep.subr.bf16.mxu0 0
      %930 = vmatpush1.bf16.msra.mxu0 0
      %931 = vmatprep.mubr.bf16.mxu0 0
      %932 = vmatmul.mubr.bf16.gmra.mrb[0].mxu0 %v852
      %v933 = vpop.f32.mrb[0].mxu0
      %v934 = vadd.f32 0.0, %v933
      %v935 = vpop.f32.mrb[0].mxu0
      %v936 = vpop.f32.mrb[0].mxu0
      %v937 = vadd.f32 0.0, %v936
      %v938 = vpop.f32.mrb[0].mxu0
      %939 = vmatprep.mubr.bf16.mxu0 0
      %940 = vmatmul.mubr.bf16.gmra.mrb[0].mxu0 %v855
      %v941 = vpop.f32.mrb[0].mxu0
      %v942 = vadd.f32 0.0, %v941
      %v943 = vpop.f32.mrb[0].mxu0
      %v944 = vpop.f32.mrb[0].mxu0
      %v945 = vadd.f32 0.0, %v944
      %v946 = vpop.f32.mrb[0].mxu0
      %947 = vmatprep.mubr.bf16.mxu0 0
      %948 = vmatmul.mubr.bf16.gmra.mrb[0].mxu0 %v858
      %v949 = vpop.f32.mrb[0].mxu0
      %v950 = vadd.f32 0.0, %v949
      %v951 = vpop.f32.mrb[0].mxu0
      %v952 = vpop.f32.mrb[0].mxu0
      %v953 = vadd.f32 0.0, %v952
      %v954 = vpop.f32.mrb[0].mxu0
      %955 = vmatprep.mubr.bf16.mxu0 0
      %956 = vmatmul.mubr.bf16.gmra.mrb[0].mxu0 %v861
      %v957 = vpop.f32.mrb[0].mxu0
      %v958 = vadd.f32 0.0, %v957
      %v959 = vpop.f32.mrb[0].mxu0
      %v960 = vpop.f32.mrb[0].mxu0
      %v961 = vadd.f32 0.0, %v960
      %v962 = vpop.f32.mrb[0].mxu0
      %963 = vmatprep.mubr.bf16.mxu0 0
      %964 = vmatmul.mubr.bf16.gmra.mrb[0].mxu0 %v864
      %v965 = vpop.f32.mrb[0].mxu0
      %v966 = vadd.f32 0.0, %v965
      %v967 = vpop.f32.mrb[0].mxu0
      %v968 = vpop.f32.mrb[0].mxu0
      %v969 = vadd.f32 0.0, %v968
      %v970 = vpop.f32.mrb[0].mxu0
      %971 = vmatprep.mubr.bf16.mxu0 0
      %972 = vmatmul.mubr.bf16.gmra.mrb[0].mxu0 %v867
      %v973 = vpop.f32.mrb[0].mxu0
      %v974 = vadd.f32 0.0, %v973
      %v975 = vpop.f32.mrb[0].mxu0
      %v976 = vpop.f32.mrb[0].mxu0
      %v977 = vadd.f32 0.0, %v976
      %v978 = vpop.f32.mrb[0].mxu0
      %979 = vmatprep.mubr.bf16.mxu0 0
      %980 = vmatmul.mubr.bf16.gmra.mrb[0].mxu0 %v870
      %v981 = vpop.f32.mrb[0].mxu0
      %v982 = vadd.f32 0.0, %v981
      %v983 = vpop.f32.mrb[0].mxu0
      %v984 = vpop.f32.mrb[0].mxu0
      %v985 = vadd.f32 0.0, %v984
      %v986 = vpop.f32.mrb[0].mxu0
      %987 = vmatprep.mubr.bf16.mxu0 0
      %988 = vmatmul.mubr.bf16.gmra.mrb[0].mxu0 %v873
      %v989 = vpop.f32.mrb[0].mxu0
      %v990 = vadd.f32 0.0, %v989
      %v991 = vpop.f32.mrb[0].mxu0
      %v992 = vpop.f32.mrb[0].mxu0
      %v993 = vadd.f32 0.0, %v992
      %v994 = vpop.f32.mrb[0].mxu0
      %995 = vmatprep.mubr.bf16.mxu0 0
      %996 = vmatmul.mubr.bf16.gmra.mrb[0].mxu0 %v876
      %v997 = vpop.f32.mrb[0].mxu0
      %v998 = vadd.f32 0.0, %v997
      %v999 = vpop.f32.mrb[0].mxu0
      %v1000 = vpop.f32.mrb[0].mxu0
      %v1001 = vadd.f32 0.0, %v1000
      %v1002 = vpop.f32.mrb[0].mxu0
      %1003 = vmatprep.mubr.bf16.mxu0 0
      %1004 = vmatmul.mubr.bf16.gmra.mrb[0].mxu0 %v879
      %v1005 = vpop.f32.mrb[0].mxu0
      %v1006 = vadd.f32 0.0, %v1005
      %v1007 = vpop.f32.mrb[0].mxu0
      %v1008 = vpop.f32.mrb[0].mxu0
      %v1009 = vadd.f32 0.0, %v1008
      %v1010 = vpop.f32.mrb[0].mxu0
      %1011 = vmatprep.mubr.bf16.mxu0 0
      %1012 = vmatmul.mubr.bf16.gmra.mrb[0].mxu0 %v882
      %v1013 = vpop.f32.mrb[0].mxu0
      %v1014 = vadd.f32 0.0, %v1013
      %v1015 = vpop.f32.mrb[0].mxu0
      %v1016 = vpop.f32.mrb[0].mxu0
      %v1017 = vadd.f32 0.0, %v1016
      %v1018 = vpop.f32.mrb[0].mxu0
      %1019 = vmatprep.mubr.bf16.mxu0 0
      %1020 = vmatmul.mubr.bf16.gmra.mrb[0].mxu0 %v885
      %v1021 = vpop.f32.mrb[0].mxu0
      %v1022 = vadd.f32 0.0, %v1021
      %v1023 = vpop.f32.mrb[0].mxu0
      %v1024 = vpop.f32.mrb[0].mxu0
      %v1025 = vadd.f32 0.0, %v1024
      %v1026 = vpop.f32.mrb[0].mxu0
      %1027 = vmatprep.mubr.bf16.mxu0 0
      %1028 = vmatmul.mubr.bf16.gmra.mrb[0].mxu0 %v888
      %v1029 = vpop.f32.mrb[0].mxu0
      %v1030 = vadd.f32 0.0, %v1029
      %v1031 = vpop.f32.mrb[0].mxu0
      %v1032 = vpop.f32.mrb[0].mxu0
      %v1033 = vadd.f32 0.0, %v1032
      %v1034 = vpop.f32.mrb[0].mxu0
      %1035 = vmatprep.mubr.bf16.mxu0 0
      %1036 = vmatmul.mubr.bf16.gmra.mrb[0].mxu0 %v891
      %v1037 = vpop.f32.mrb[0].mxu0
      %v1038 = vadd.f32 0.0, %v1037
      %v1039 = vpop.f32.mrb[0].mxu0
      %v1040 = vpop.f32.mrb[0].mxu0
      %v1041 = vadd.f32 0.0, %v1040
      %v1042 = vpop.f32.mrb[0].mxu0
      %1043 = vmatprep.mubr.bf16.mxu0 0
      %1044 = vmatmul.mubr.bf16.gmra.mrb[0].mxu0 %v894
      %v1045 = vpop.f32.mrb[0].mxu0
      %v1046 = vadd.f32 0.0, %v1045
      %v1047 = vpop.f32.mrb[0].mxu0
      %v1048 = vpop.f32.mrb[0].mxu0
      %v1049 = vadd.f32 0.0, %v1048
      %v1050 = vpop.f32.mrb[0].mxu0
      %1051 = vmatprep.mubr.bf16.mxu0 0
      %1052 = vmatmul.mubr.bf16.gmra.mrb[0].mxu0 %v897
      %v1053 = vpop.f32.mrb[0].mxu0
      %v1054 = vadd.f32 0.0, %v1053
      %v1055 = vpop.f32.mrb[0].mxu0
      %v1056 = vpop.f32.mrb[0].mxu0
      %v1057 = vadd.f32 0.0, %v1056
      %v1058 = vpop.f32.mrb[0].mxu0
      %1059 = vdwg.mxu0
      %1062 = vrot.lane.b32.xlu0 %v942, 32
      %v1063 = vpop.permute.xlu0 %1062
      %1064 = vrot.lane.b32.xlu0 %v945, 32
      %v1065 = vpop.permute.xlu0 %1064
      %1070 = vrot.lane.b32.xlu0 %v950, 64
      %v1071 = vpop.permute.xlu0 %1070
      %1072 = vrot.lane.b32.xlu0 %v953, 64
      %v1073 = vpop.permute.xlu0 %1072
      %1078 = vrot.lane.b32.xlu0 %v958, 96
      %v1079 = vpop.permute.xlu0 %1078
      %1080 = vrot.lane.b32.xlu0 %v961, 96
      %v1081 = vpop.permute.xlu0 %1080
      %1086 = vrot.lane.b32.xlu0 %v974, 32
      %v1087 = vpop.permute.xlu0 %1086
      %1088 = vrot.lane.b32.xlu0 %v977, 32
      %v1089 = vpop.permute.xlu0 %1088
      %1094 = vrot.lane.b32.xlu0 %v982, 64
      %v1095 = vpop.permute.xlu0 %1094
      %1096 = vrot.lane.b32.xlu0 %v985, 64
      %v1097 = vpop.permute.xlu0 %1096
      %1102 = vrot.lane.b32.xlu0 %v990, 96
      %v1103 = vpop.permute.xlu0 %1102
      %1104 = vrot.lane.b32.xlu0 %v993, 96
      %v1105 = vpop.permute.xlu0 %1104
      %1110 = vrot.lane.b32.xlu0 %v1006, 32
      %v1111 = vpop.permute.xlu0 %1110
      %1112 = vrot.lane.b32.xlu0 %v1009, 32
      %v1113 = vpop.permute.xlu0 %1112
      %1118 = vrot.lane.b32.xlu0 %v1014, 64
      %v1119 = vpop.permute.xlu0 %1118
      %1120 = vrot.lane.b32.xlu0 %v1017, 64
      %v1121 = vpop.permute.xlu0 %1120
      %1126 = vrot.lane.b32.xlu0 %v1022, 96
      %v1127 = vpop.permute.xlu0 %1126
      %1128 = vrot.lane.b32.xlu0 %v1025, 96
      %v1129 = vpop.permute.xlu0 %1128
      %1134 = vrot.lane.b32.xlu0 %v1038, 32
      %v1135 = vpop.permute.xlu0 %1134
      %1136 = vrot.lane.b32.xlu0 %v1041, 32
      %v1137 = vpop.permute.xlu0 %1136
      %1142 = vrot.lane.b32.xlu0 %v1046, 64
      %v1143 = vpop.permute.xlu0 %1142
      %1144 = vrot.lane.b32.xlu0 %v1049, 64
      %v1145 = vpop.permute.xlu0 %1144
      %1150 = vrot.lane.b32.xlu0 %v1054, 96
      %v1151 = vpop.permute.xlu0 %1150
      %1152 = vrot.lane.b32.xlu0 %v1057, 96
      %v1153 = vpop.permute.xlu0 %1152
      %vm1156 = vcmask 261120
      %v1157 = vsel %vm1156, %v934, %v1063
      %v1158 = vsel %vm1156, %v937, %v1065
      %v1159 = vsel %vm850, %v1157, %v1071
      %v1160 = vsel %vm850, %v1158, %v1073
      %vm1161 = vcmask 785408
      %v1162 = vsel %vm1161, %v1159, %v1079
      %v1163 = vsel %vm1161, %v1160, %v1081
      %v1164 = vsel %vm1156, %v966, %v1087
      %v1165 = vsel %vm1156, %v969, %v1089
      %v1166 = vsel %vm850, %v1164, %v1095
      %v1167 = vsel %vm850, %v1165, %v1097
      %v1168 = vsel %vm1161, %v1166, %v1103
      %v1169 = vsel %vm1161, %v1167, %v1105
      %v1170 = vsel %vm1156, %v998, %v1111
      %v1171 = vsel %vm1156, %v1001, %v1113
      %v1172 = vsel %vm850, %v1170, %v1119
      %v1173 = vsel %vm850, %v1171, %v1121
      %v1174 = vsel %vm1161, %v1172, %v1127
      %v1175 = vsel %vm1161, %v1173, %v1129
      %v1176 = vsel %vm1156, %v1030, %v1135
      %v1177 = vsel %vm1156, %v1033, %v1137
      %v1178 = vsel %vm850, %v1176, %v1143
      %v1179 = vsel %vm850, %v1177, %v1145
      %v1180 = vsel %vm1161, %v1178, %v1151
      %v1181 = vsel %vm1161, %v1179, %v1153
      %v1182 = vpack.c.bf16 %v1163, %v1162
      %v1183 = vpack.c.bf16 %v1169, %v1168
      %v1184 = vpack.c.bf16 %v1175, %v1174
      %v1185 = vpack.c.bf16 %v1181, %v1180
      %v1186 = vld [vmem:[%s4] sm:$0xf]
      %v1187 = vld [vmem:[%s4 + $0x4] sm:$0xf]
      %v1188 = vld [vmem:[%s4 + $0x8] sm:$0xf]
      %v1189 = vld [vmem:[%s4 + $0xc] sm:$0xf]
      %v1190 = vld [vmem:[%s4 + $0x10] sm:$0xf]
      %v1191 = vld [vmem:[%s4 + $0x14] sm:$0xf]
      %v1192 = vld [vmem:[%s4 + $0x18] sm:$0xf]
      %v1193 = vld [vmem:[%s4 + $0x1c] sm:$0xf]
      %v1194 = vld [vmem:[%s4 + $0x20] sm:$0xf]
      %v1195 = vld [vmem:[%s4 + $0x24] sm:$0xf]
      %v1196 = vld [vmem:[%s4 + $0x28] sm:$0xf]
      %v1197 = vld [vmem:[%s4 + $0x2c] sm:$0xf]
      %v1198 = vld [vmem:[%s4 + $0x30] sm:$0xf]
      %v1199 = vld [vmem:[%s4 + $0x34] sm:$0xf]
      %v1200 = vld [vmem:[%s4 + $0x38] sm:$0xf]
      %v1201 = vld [vmem:[%s4 + $0x3c] sm:$0xf]
      %v1202 = vld [vmem:[%s4 + $0x40] sm:$0xf]
      %v1203 = vld [vmem:[%s4 + $0x44] sm:$0xf]
      %v1204 = vld [vmem:[%s4 + $0x48] sm:$0xf]
      %v1205 = vld [vmem:[%s4 + $0x4c] sm:$0xf]
      %v1206 = vld [vmem:[%s4 + $0x50] sm:$0xf]
      %v1207 = vld [vmem:[%s4 + $0x54] sm:$0xf]
      %v1208 = vld [vmem:[%s4 + $0x58] sm:$0xf]
      %v1209 = vld [vmem:[%s4 + $0x5c] sm:$0xf]
      %v1210 = vld [vmem:[%s4 + $0x60] sm:$0xf]
      %v1211 = vld [vmem:[%s4 + $0x64] sm:$0xf]
      %v1212 = vld [vmem:[%s4 + $0x68] sm:$0xf]
      %v1213 = vld [vmem:[%s4 + $0x6c] sm:$0xf]
      %v1214 = vld [vmem:[%s4 + $0x70] sm:$0xf]
      %v1215 = vld [vmem:[%s4 + $0x74] sm:$0xf]
      %v1216 = vld [vmem:[%s4 + $0x78] sm:$0xf]
      %v1217 = vld [vmem:[%s4 + $0x7c] sm:$0xf]
      %v1218 = vld [vmem:[%s4 + $0x80] sm:$0xf]
      %v1219 = vld [vmem:[%s4 + $0x84] sm:$0xf]
      %v1220 = vld [vmem:[%s4 + $0x88] sm:$0xf]
      %v1221 = vld [vmem:[%s4 + $0x8c] sm:$0xf]
      %v1222 = vld [vmem:[%s4 + $0x90] sm:$0xf]
      %v1223 = vld [vmem:[%s4 + $0x94] sm:$0xf]
      %v1224 = vld [vmem:[%s4 + $0x98] sm:$0xf]
      %v1225 = vld [vmem:[%s4 + $0x9c] sm:$0xf]
      %v1226 = vld [vmem:[%s4 + $0xa0] sm:$0xf]
      %v1227 = vld [vmem:[%s4 + $0xa4] sm:$0xf]
      %v1228 = vld [vmem:[%s4 + $0xa8] sm:$0xf]
      %v1229 = vld [vmem:[%s4 + $0xac] sm:$0xf]
      %v1230 = vld [vmem:[%s4 + $0xb0] sm:$0xf]
      %v1231 = vld [vmem:[%s4 + $0xb4] sm:$0xf]
      %v1232 = vld [vmem:[%s4 + $0xb8] sm:$0xf]
      %v1233 = vld [vmem:[%s4 + $0xbc] sm:$0xf]
      %v1234 = vld [vmem:[%s4 + $0xc0] sm:$0xf]
      %v1235 = vld [vmem:[%s4 + $0xc4] sm:$0xf]
      %v1236 = vld [vmem:[%s4 + $0xc8] sm:$0xf]
      %v1237 = vld [vmem:[%s4 + $0xcc] sm:$0xf]
      %v1238 = vld [vmem:[%s4 + $0xd0] sm:$0xf]
      %v1239 = vld [vmem:[%s4 + $0xd4] sm:$0xf]
      %v1240 = vld [vmem:[%s4 + $0xd8] sm:$0xf]
      %v1241 = vld [vmem:[%s4 + $0xdc] sm:$0xf]
      %v1242 = vld [vmem:[%s4 + $0xe0] sm:$0xf]
      %v1243 = vld [vmem:[%s4 + $0xe4] sm:$0xf]
      %v1244 = vld [vmem:[%s4 + $0xe8] sm:$0xf]
      %v1245 = vld [vmem:[%s4 + $0xec] sm:$0xf]
      %v1246 = vld [vmem:[%s4 + $0xf0] sm:$0xf]
      %v1247 = vld [vmem:[%s4 + $0xf4] sm:$0xf]
      %v1248 = vld [vmem:[%s4 + $0xf8] sm:$0xf]
      %v1249 = vld [vmem:[%s4 + $0xfc] sm:$0xf]
      %v1250 = vld [vmem:[%s5] sm:$0x1]
      %v1252 = vlaneseq
      %v1253 = vshrl.u32 %v1252, 7
      %v1254 = vsub.s32 0, %v1253
      %v1255 = vrot.slane %v1250, %v1254
      %v1321 = vunpack.c.l.b16 %v1186
      %v1322 = vunpack.c.l.b16 %v1187
      %v1323 = vunpack.c.l.b16 %v1188
      %v1324 = vunpack.c.l.b16 %v1189
      %v1325 = vunpack.c.l.b16 %v1190
      %v1326 = vunpack.c.l.b16 %v1191
      %v1327 = vunpack.c.l.b16 %v1192
      %v1328 = vunpack.c.l.b16 %v1193
      %v1329 = vunpack.c.l.b16 %v1194
      %v1330 = vunpack.c.l.b16 %v1195
      %v1331 = vunpack.c.l.b16 %v1196
      %v1332 = vunpack.c.l.b16 %v1197
      %v1333 = vunpack.c.l.b16 %v1198
      %v1334 = vunpack.c.l.b16 %v1199
      %v1335 = vunpack.c.l.b16 %v1200
      %v1336 = vunpack.c.l.b16 %v1201
      %v1337 = vunpack.c.l.b16 %v1202
      %v1338 = vunpack.c.l.b16 %v1203
      %v1339 = vunpack.c.l.b16 %v1204
      %v1340 = vunpack.c.l.b16 %v1205
      %v1341 = vunpack.c.l.b16 %v1206
      %v1342 = vunpack.c.l.b16 %v1207
      %v1343 = vunpack.c.l.b16 %v1208
      %v1344 = vunpack.c.l.b16 %v1209
      %v1345 = vunpack.c.l.b16 %v1210
      %v1346 = vunpack.c.l.b16 %v1211
      %v1347 = vunpack.c.l.b16 %v1212
      %v1348 = vunpack.c.l.b16 %v1213
      %v1349 = vunpack.c.l.b16 %v1214
      %v1350 = vunpack.c.l.b16 %v1215
      %v1351 = vunpack.c.l.b16 %v1216
      %v1352 = vunpack.c.l.b16 %v1217
      %v1353 = vunpack.c.l.b16 %v1218
      %v1354 = vunpack.c.l.b16 %v1219
      %v1355 = vunpack.c.l.b16 %v1220
      %v1356 = vunpack.c.l.b16 %v1221
      %v1357 = vunpack.c.l.b16 %v1222
      %v1358 = vunpack.c.l.b16 %v1223
      %v1359 = vunpack.c.l.b16 %v1224
      %v1360 = vunpack.c.l.b16 %v1225
      %v1361 = vunpack.c.l.b16 %v1226
      %v1362 = vunpack.c.l.b16 %v1227
      %v1363 = vunpack.c.l.b16 %v1228
      %v1364 = vunpack.c.l.b16 %v1229
      %v1365 = vunpack.c.l.b16 %v1230
      %v1366 = vunpack.c.l.b16 %v1231
      %v1367 = vunpack.c.l.b16 %v1232
      %v1368 = vunpack.c.l.b16 %v1233
      %v1369 = vunpack.c.l.b16 %v1234
      %v1370 = vunpack.c.l.b16 %v1235
      %v1371 = vunpack.c.l.b16 %v1236
      %v1372 = vunpack.c.l.b16 %v1237
      %v1373 = vunpack.c.l.b16 %v1238
      %v1374 = vunpack.c.l.b16 %v1239
      %v1375 = vunpack.c.l.b16 %v1240
      %v1376 = vunpack.c.l.b16 %v1241
      %v1377 = vunpack.c.l.b16 %v1242
      %v1378 = vunpack.c.l.b16 %v1243
      %v1379 = vunpack.c.l.b16 %v1244
      %v1380 = vunpack.c.l.b16 %v1245
      %v1381 = vunpack.c.l.b16 %v1246
      %v1382 = vunpack.c.l.b16 %v1247
      %v1383 = vunpack.c.l.b16 %v1248
      %v1384 = vunpack.c.l.b16 %v1249
      %v1385 = vpack.c.b16 %v1322, %v1321
      %v1386 = vpack.c.b16 %v1324, %v1323
      %v1387 = vpack.c.b16 %v1326, %v1325
      %v1388 = vpack.c.b16 %v1328, %v1327
      %v1389 = vpack.c.b16 %v1330, %v1329
      %v1390 = vpack.c.b16 %v1332, %v1331
      %v1391 = vpack.c.b16 %v1334, %v1333
      %v1392 = vpack.c.b16 %v1336, %v1335
      %v1393 = vpack.c.b16 %v1338, %v1337
      %v1394 = vpack.c.b16 %v1340, %v1339
      %v1395 = vpack.c.b16 %v1342, %v1341
      %v1396 = vpack.c.b16 %v1344, %v1343
      %v1397 = vpack.c.b16 %v1346, %v1345
      %v1398 = vpack.c.b16 %v1348, %v1347
      %v1399 = vpack.c.b16 %v1350, %v1349
      %v1400 = vpack.c.b16 %v1352, %v1351
      %v1401 = vpack.c.b16 %v1354, %v1353
      %v1402 = vpack.c.b16 %v1356, %v1355
      %v1403 = vpack.c.b16 %v1358, %v1357
      %v1404 = vpack.c.b16 %v1360, %v1359
      %v1405 = vpack.c.b16 %v1362, %v1361
      %v1406 = vpack.c.b16 %v1364, %v1363
      %v1407 = vpack.c.b16 %v1366, %v1365
      %v1408 = vpack.c.b16 %v1368, %v1367
      %v1409 = vpack.c.b16 %v1370, %v1369
      %v1410 = vpack.c.b16 %v1372, %v1371
      %v1411 = vpack.c.b16 %v1374, %v1373
      %v1412 = vpack.c.b16 %v1376, %v1375
      %v1413 = vpack.c.b16 %v1378, %v1377
      %v1414 = vpack.c.b16 %v1380, %v1379
      %v1415 = vpack.c.b16 %v1382, %v1381
      %v1416 = vpack.c.b16 %v1384, %v1383
      %1449 = vmatprep.subr.bf16.mxu0 0
      %1450 = vmatpush1.bf16.msra.mxu0 %v1385
      %1451 = vmatprep.subr.bf16.mxu0 0
      %1452 = vmatpush1.bf16.msra.mxu0 %v1386
      %1453 = vmatprep.subr.bf16.mxu0 0
      %1454 = vmatpush1.bf16.msra.mxu0 %v1387
      %1455 = vmatprep.subr.bf16.mxu0 0
      %1456 = vmatpush1.bf16.msra.mxu0 %v1388
      %1457 = vmatprep.subr.bf16.mxu0 0
      %1458 = vmatpush1.bf16.msra.mxu0 %v1389
      %1459 = vmatprep.subr.bf16.mxu0 0
      %1460 = vmatpush1.bf16.msra.mxu0 %v1390
      %1461 = vmatprep.subr.bf16.mxu0 0
      %1462 = vmatpush1.bf16.msra.mxu0 %v1391
      %1463 = vmatprep.subr.bf16.mxu0 0
      %1464 = vmatpush1.bf16.msra.mxu0 %v1392
      %1465 = vmatprep.subr.bf16.mxu0 0
      %1466 = vmatpush1.bf16.msra.mxu0 %v1393
      %1467 = vmatprep.subr.bf16.mxu0 0
      %1468 = vmatpush1.bf16.msra.mxu0 %v1394
      %1469 = vmatprep.subr.bf16.mxu0 0
      %1470 = vmatpush1.bf16.msra.mxu0 %v1395
      %1471 = vmatprep.subr.bf16.mxu0 0
      %1472 = vmatpush1.bf16.msra.mxu0 %v1396
      %1473 = vmatprep.subr.bf16.mxu0 0
      %1474 = vmatpush1.bf16.msra.mxu0 %v1397
      %1475 = vmatprep.subr.bf16.mxu0 0
      %1476 = vmatpush1.bf16.msra.mxu0 %v1398
      %1477 = vmatprep.subr.bf16.mxu0 0
      %1478 = vmatpush1.bf16.msra.mxu0 %v1399
      %1479 = vmatprep.subr.bf16.mxu0 0
      %1480 = vmatpush1.bf16.msra.mxu0 %v1400
      %1481 = vmatprep.mubr.bf16.mxu0 %v1183
      %1482 = vmatmul.mubr.bf16.gmra.mrb[0].mxu0 %v1182
      %v1483 = vpop.f32.mrb[0].mxu0
      %v1484 = vadd.f32 %v1255, %v1483
      %v1485 = vpop.f32.mrb[0].mxu0
      %v1486 = vpop.f32.mrb[0].mxu0
      %v1487 = vadd.f32 %v1255, %v1486
      %v1488 = vpop.f32.mrb[0].mxu0
      %1489 = vdwg.mxu0
      %1490 = vmatprep.subr.bf16.mxu0 0
      %1491 = vmatpush1.bf16.msra.mxu0 %v1401
      %1492 = vmatprep.subr.bf16.mxu0 0
      %1493 = vmatpush1.bf16.msra.mxu0 %v1402
      %1494 = vmatprep.subr.bf16.mxu0 0
      %1495 = vmatpush1.bf16.msra.mxu0 %v1403
      %1496 = vmatprep.subr.bf16.mxu0 0
      %1497 = vmatpush1.bf16.msra.mxu0 %v1404
      %1498 = vmatprep.subr.bf16.mxu0 0
      %1499 = vmatpush1.bf16.msra.mxu0 %v1405
      %1500 = vmatprep.subr.bf16.mxu0 0
      %1501 = vmatpush1.bf16.msra.mxu0 %v1406
      %1502 = vmatprep.subr.bf16.mxu0 0
      %1503 = vmatpush1.bf16.msra.mxu0 %v1407
      %1504 = vmatprep.subr.bf16.mxu0 0
      %1505 = vmatpush1.bf16.msra.mxu0 %v1408
      %1506 = vmatprep.subr.bf16.mxu0 0
      %1507 = vmatpush1.bf16.msra.mxu0 %v1409
      %1508 = vmatprep.subr.bf16.mxu0 0
      %1509 = vmatpush1.bf16.msra.mxu0 %v1410
      %1510 = vmatprep.subr.bf16.mxu0 0
      %1511 = vmatpush1.bf16.msra.mxu0 %v1411
      %1512 = vmatprep.subr.bf16.mxu0 0
      %1513 = vmatpush1.bf16.msra.mxu0 %v1412
      %1514 = vmatprep.subr.bf16.mxu0 0
      %1515 = vmatpush1.bf16.msra.mxu0 %v1413
      %1516 = vmatprep.subr.bf16.mxu0 0
      %1517 = vmatpush1.bf16.msra.mxu0 %v1414
      %1518 = vmatprep.subr.bf16.mxu0 0
      %1519 = vmatpush1.bf16.msra.mxu0 %v1415
      %1520 = vmatprep.subr.bf16.mxu0 0
      %1521 = vmatpush1.bf16.msra.mxu0 %v1416
      %1522 = vmatprep.mubr.bf16.mxu0 %v1185
      %1523 = vmatmul.mubr.bf16.gmra.mrb[0].mxu0 %v1184
      %v1524 = vpop.f32.mrb[0].mxu0
      %v1525 = vadd.f32 %v1484, %v1524
      %v1526 = vpop.f32.mrb[0].mxu0
      %v1527 = vpop.f32.mrb[0].mxu0
      %v1528 = vadd.f32 %v1487, %v1527
      %v1529 = vpop.f32.mrb[0].mxu0
      %1530 = vdwg.mxu0
      %vm1531 = vcmp.gt.f32.partialorder %v1525, 0.0
      %vm1532 = vcmp.gt.f32.partialorder %v1528, 0.0
      %v1533 = vmin.f32 %v1525, 0.0
      %v1534 = vmin.f32 %v1528, 0.0
      %v1535 = vmul.f32 %v1533, 1.442695
      %v1536 = vpow.pop %v1535
      %v1537 = vmul.f32 %v1534, 1.442695
      %v1538 = vpow.pop %v1537
      %v1539 = vsub.f32 %v1536, 1.0
      %v1540 = vsub.f32 %v1538, 1.0
      %v1541 = vsel %vm1531, %v1525, %v1539
      %v1542 = vsel %vm1532, %v1528, %v1540
      %v1543 = vpack.c.bf16 %v1542, %v1541
      %v1544 = vld [vmem:[%s6] sm:$0xf]
      %v1545 = vld [vmem:[%s6 + $0x4] sm:$0xf]
      %v1546 = vld [vmem:[%s6 + $0x8] sm:$0xf]
      %v1547 = vld [vmem:[%s6 + $0xc] sm:$0xf]
      %v1548 = vld [vmem:[%s6 + $0x10] sm:$0xf]
      %v1549 = vld [vmem:[%s6 + $0x14] sm:$0xf]
      %v1550 = vld [vmem:[%s6 + $0x18] sm:$0xf]
      %v1551 = vld [vmem:[%s6 + $0x1c] sm:$0xf]
      %v1552 = vld [vmem:[%s6 + $0x20] sm:$0xf]
      %v1562 = vunpack.c.l.b16 %v1544
      %v1563 = vunpack.c.l.b16 %v1545
      %v1564 = vunpack.c.l.b16 %v1546
      %v1565 = vunpack.c.l.b16 %v1547
      %v1566 = vunpack.c.l.b16 %v1548
      %v1567 = vunpack.c.l.b16 %v1549
      %v1568 = vunpack.c.l.b16 %v1550
      %v1569 = vunpack.c.l.b16 %v1551
      %v1570 = vunpack.c.l.b16 %v1552
      %v1571 = vpack.c.b16 %v1563, %v1562
      %v1572 = vpack.c.b16 %v1565, %v1564
      %v1573 = vpack.c.b16 %v1567, %v1566
      %v1574 = vpack.c.b16 %v1569, %v1568
      %v1575 = vpack.c.b16 %v1570, %v1570
      %vm1576 = vcmask 130048
      %v1578 = vsel %vm1576, %v1571, 0
      %v1581 = vsel %vm1576, %v1572, 0
      %v1584 = vsel %vm1576, %v1573, 0
      %v1587 = vsel %vm1576, %v1574, 0
      %v1590 = vsel %vm1576, %v1575, 0
      %1592 = vmatprep.subr.bf16.mxu0 0
      %1593 = vmatpush1.bf16.msra.mxu0 %v1543
      %1594 = vmatprep.subr.bf16.mxu0 0
      %1595 = vmatpush1.bf16.msra.mxu0 0
      %1596 = vmatprep.subr.bf16.mxu0 0
      %1597 = vmatpush1.bf16.msra.mxu0 0
      %1598 = vmatprep.subr.bf16.mxu0 0
      %1599 = vmatpush1.bf16.msra.mxu0 0
      %1600 = vmatprep.subr.bf16.mxu0 0
      %1601 = vmatpush1.bf16.msra.mxu0 0
      %1602 = vmatprep.subr.bf16.mxu0 0
      %1603 = vmatpush1.bf16.msra.mxu0 0
      %1604 = vmatprep.subr.bf16.mxu0 0
      %1605 = vmatpush1.bf16.msra.mxu0 0
      %1606 = vmatprep.subr.bf16.mxu0 0
      %1607 = vmatpush1.bf16.msra.mxu0 0
      %1608 = vmatprep.subr.bf16.mxu0 0
      %1609 = vmatpush1.bf16.msra.mxu0 0
      %1610 = vmatprep.subr.bf16.mxu0 0
      %1611 = vmatpush1.bf16.msra.mxu0 0
      %1612 = vmatprep.subr.bf16.mxu0 0
      %1613 = vmatpush1.bf16.msra.mxu0 0
      %1614 = vmatprep.subr.bf16.mxu0 0
      %1615 = vmatpush1.bf16.msra.mxu0 0
      %1616 = vmatprep.subr.bf16.mxu0 0
      %1617 = vmatpush1.bf16.msra.mxu0 0
      %1618 = vmatprep.subr.bf16.mxu0 0
      %1619 = vmatpush1.bf16.msra.mxu0 0
      %1620 = vmatprep.subr.bf16.mxu0 0
      %1621 = vmatpush1.bf16.msra.mxu0 0
      %1622 = vmatprep.subr.bf16.mxu0 0
      %1623 = vmatpush1.bf16.msra.mxu0 0
      %1624 = vmatprep.mubr.bf16.mxu0 0
      %1625 = vmatmul.mubr.bf16.gmra.mrb[0].mxu0 %v1578
      %v1626 = vpop.f32.mrb[0].mxu0
      %v1627 = vadd.f32 0.0, %v1626
      %v1628 = vpop.f32.mrb[0].mxu0
      %v1629 = vpop.f32.mrb[0].mxu0
      %v1630 = vadd.f32 0.0, %v1629
      %v1631 = vpop.f32.mrb[0].mxu0
      %1632 = vmatprep.mubr.bf16.mxu0 0
      %1633 = vmatmul.mubr.bf16.gmra.mrb[0].mxu0 %v1581
      %v1634 = vpop.f32.mrb[0].mxu0
      %v1635 = vadd.f32 0.0, %v1634
      %v1636 = vpop.f32.mrb[0].mxu0
      %v1637 = vpop.f32.mrb[0].mxu0
      %v1638 = vadd.f32 0.0, %v1637
      %v1639 = vpop.f32.mrb[0].mxu0
      %1640 = vmatprep.mubr.bf16.mxu0 0
      %1641 = vmatmul.mubr.bf16.gmra.mrb[0].mxu0 %v1584
      %v1642 = vpop.f32.mrb[0].mxu0
      %v1643 = vadd.f32 0.0, %v1642
      %v1644 = vpop.f32.mrb[0].mxu0
      %v1645 = vpop.f32.mrb[0].mxu0
      %v1646 = vadd.f32 0.0, %v1645
      %v1647 = vpop.f32.mrb[0].mxu0
      %1648 = vmatprep.mubr.bf16.mxu0 0
      %1649 = vmatmul.mubr.bf16.gmra.mrb[0].mxu0 %v1587
      %v1650 = vpop.f32.mrb[0].mxu0
      %v1651 = vadd.f32 0.0, %v1650
      %v1652 = vpop.f32.mrb[0].mxu0
      %v1653 = vpop.f32.mrb[0].mxu0
      %v1654 = vadd.f32 0.0, %v1653
      %v1655 = vpop.f32.mrb[0].mxu0
      %1656 = vmatprep.mubr.bf16.mxu0 0
      %1657 = vmatmul.mubr.bf16.gmra.mrb[0].mxu0 %v1590
      %v1658 = vpop.f32.mrb[0].mxu0
      %v1659 = vadd.f32 0.0, %v1658
      %v1660 = vpop.f32.mrb[0].mxu0
      %v1661 = vpop.f32.mrb[0].mxu0
      %v1662 = vpop.f32.mrb[0].mxu0
      %1663 = vdwg.mxu0
      %1665 = vrot.lane.b32.xlu0 %v1630, 64
      %v1666 = vpop.permute.xlu0 %1665
      %1669 = vrot.lane.b32.xlu0 %v1638, 64
      %v1670 = vpop.permute.xlu0 %1669
      %1673 = vrot.lane.b32.xlu0 %v1646, 64
      %v1674 = vpop.permute.xlu0 %1673
      %1677 = vrot.lane.b32.xlu0 %v1654, 64
      %v1678 = vpop.permute.xlu0 %1677
      %v1680 = vsel %vm850, %v1627, %v1666
      %v1681 = vsel %vm850, %v1635, %v1670
      %v1682 = vsel %vm850, %v1643, %v1674
      %v1683 = vsel %vm850, %v1651, %v1678
      %v1684 = vpack.c.bf16 %v1680, %v1680
      %v1685 = vpack.c.bf16 %v1681, %v1681
      %v1686 = vpack.c.bf16 %v1682, %v1682
      %v1687 = vpack.c.bf16 %v1683, %v1683
      %v1688 = vpack.c.bf16 %v1659, %v1659
      %v1689 = vld [vmem:[%s7] sm:$0xf]
      %v1690 = vld [vmem:[%s7 + $0x4] sm:$0xf]
      %v1691 = vld [vmem:[%s7 + $0x8] sm:$0xf]
      %v1692 = vld [vmem:[%s7 + $0xc] sm:$0xf]
      %v1693 = vld [vmem:[%s7 + $0x10] sm:$0xf]
      %v1694 = vld [vmem:[%s7 + $0x14] sm:$0xf]
      %v1695 = vld [vmem:[%s7 + $0x18] sm:$0xf]
      %v1696 = vld [vmem:[%s7 + $0x1c] sm:$0xf]
      %v1697 = vld [vmem:[%s7 + $0x20] sm:$0xf]
      %v1698 = vld [vmem:[%s7 + $0x24] sm:$0xf]
      %v1699 = vld [vmem:[%s7 + $0x28] sm:$0xf]
      %v1700 = vld [vmem:[%s7 + $0x2c] sm:$0xf]
      %v1701 = vld [vmem:[%s7 + $0x30] sm:$0xf]
      %v1702 = vld [vmem:[%s7 + $0x34] sm:$0xf]
      %v1703 = vld [vmem:[%s7 + $0x38] sm:$0xf]
      %v1704 = vld [vmem:[%s7 + $0x3c] sm:$0xf]
      %v1705 = vld [vmem:[%s7 + $0x40] sm:$0xf]
      %v1706 = vld [vmem:[%s7 + $0x44] sm:$0xf]
      %v1707 = vld [vmem:[%s7 + $0x48] sm:$0xf]
      %v1708 = vld [vmem:[%s7 + $0x4c] sm:$0xf]
      %v1709 = vld [vmem:[%s7 + $0x50] sm:$0xf]
      %v1710 = vld [vmem:[%s7 + $0x54] sm:$0xf]
      %v1711 = vld [vmem:[%s7 + $0x58] sm:$0xf]
      %v1712 = vld [vmem:[%s7 + $0x5c] sm:$0xf]
      %v1713 = vld [vmem:[%s7 + $0x60] sm:$0xf]
      %v1714 = vld [vmem:[%s7 + $0x64] sm:$0xf]
      %v1715 = vld [vmem:[%s7 + $0x68] sm:$0xf]
      %v1716 = vld [vmem:[%s7 + $0x6c] sm:$0xf]
      %v1717 = vld [vmem:[%s7 + $0x70] sm:$0xf]
      %v1718 = vld [vmem:[%s7 + $0x74] sm:$0xf]
      %v1719 = vld [vmem:[%s7 + $0x78] sm:$0xf]
      %v1720 = vld [vmem:[%s7 + $0x7c] sm:$0xf]
      %v1721 = vld [vmem:[%s7 + $0x80] sm:$0xf]
      %v1722 = vld [vmem:[%s7 + $0x84] sm:$0xf]
      %v1723 = vld [vmem:[%s7 + $0x88] sm:$0xf]
      %v1724 = vld [vmem:[%s7 + $0x8c] sm:$0xf]
      %v1725 = vld [vmem:[%s7 + $0x90] sm:$0xf]
      %v1726 = vld [vmem:[%s7 + $0x94] sm:$0xf]
      %v1727 = vld [vmem:[%s7 + $0x98] sm:$0xf]
      %v1728 = vld [vmem:[%s7 + $0x9c] sm:$0xf]
      %v1729 = vld [vmem:[%s7 + $0xa0] sm:$0xf]
      %v1730 = vld [vmem:[%s7 + $0xa4] sm:$0xf]
      %v1731 = vld [vmem:[%s7 + $0xa8] sm:$0xf]
      %v1732 = vld [vmem:[%s7 + $0xac] sm:$0xf]
      %v1733 = vld [vmem:[%s7 + $0xb0] sm:$0xf]
      %v1734 = vld [vmem:[%s7 + $0xb4] sm:$0xf]
      %v1735 = vld [vmem:[%s7 + $0xb8] sm:$0xf]
      %v1736 = vld [vmem:[%s7 + $0xbc] sm:$0xf]
      %v1737 = vld [vmem:[%s7 + $0xc0] sm:$0xf]
      %v1738 = vld [vmem:[%s7 + $0xc4] sm:$0xf]
      %v1739 = vld [vmem:[%s7 + $0xc8] sm:$0xf]
      %v1740 = vld [vmem:[%s7 + $0xcc] sm:$0xf]
      %v1741 = vld [vmem:[%s7 + $0xd0] sm:$0xf]
      %v1742 = vld [vmem:[%s7 + $0xd4] sm:$0xf]
      %v1743 = vld [vmem:[%s7 + $0xd8] sm:$0xf]
      %v1744 = vld [vmem:[%s7 + $0xdc] sm:$0xf]
      %v1745 = vld [vmem:[%s7 + $0xe0] sm:$0xf]
      %v1746 = vld [vmem:[%s7 + $0xe4] sm:$0xf]
      %v1747 = vld [vmem:[%s7 + $0xe8] sm:$0xf]
      %v1748 = vld [vmem:[%s7 + $0xec] sm:$0xf]
      %v1749 = vld [vmem:[%s7 + $0xf0] sm:$0xf]
      %v1750 = vld [vmem:[%s7 + $0xf4] sm:$0xf]
      %v1751 = vld [vmem:[%s7 + $0xf8] sm:$0xf]
      %v1752 = vld [vmem:[%s7 + $0xfc] sm:$0xf]
      %v1753 = vld [vmem:[%s7 + $0x100] sm:$0xf]
      %v1754 = vld [vmem:[%s7 + $0x104] sm:$0xf]
      %v1755 = vld [vmem:[%s7 + $0x108] sm:$0xf]
      %v1756 = vld [vmem:[%s7 + $0x10c] sm:$0xf]
      %v1757 = vld [vmem:[%s7 + $0x110] sm:$0xf]
      %v1758 = vld [vmem:[%s7 + $0x114] sm:$0xf]
      %v1759 = vld [vmem:[%s7 + $0x118] sm:$0xf]
      %v1760 = vld [vmem:[%s7 + $0x11c] sm:$0xf]
      %v1761 = vld [vmem:[%s8] sm:$0x1]
      %v1763 = vlaneseq
      %v1764 = vshrl.u32 %v1763, 7
      %v1765 = vsub.s32 0, %v1764
      %v1766 = vrot.slane %v1761, %v1765
      %v1840 = vunpack.c.l.b16 %v1689
      %v1841 = vunpack.c.l.b16 %v1690
      %v1842 = vunpack.c.l.b16 %v1691
      %v1843 = vunpack.c.l.b16 %v1692
      %v1844 = vunpack.c.l.b16 %v1693
      %v1845 = vunpack.c.l.b16 %v1694
      %v1846 = vunpack.c.l.b16 %v1695
      %v1847 = vunpack.c.l.b16 %v1696
      %v1848 = vunpack.c.l.b16 %v1697
      %v1849 = vunpack.c.l.b16 %v1698
      %v1850 = vunpack.c.l.b16 %v1699
      %v1851 = vunpack.c.l.b16 %v1700
      %v1852 = vunpack.c.l.b16 %v1701
      %v1853 = vunpack.c.l.b16 %v1702
      %v1854 = vunpack.c.l.b16 %v1703
      %v1855 = vunpack.c.l.b16 %v1704
      %v1856 = vunpack.c.l.b16 %v1705
      %v1857 = vunpack.c.l.b16 %v1706
      %v1858 = vunpack.c.l.b16 %v1707
      %v1859 = vunpack.c.l.b16 %v1708
      %v1860 = vunpack.c.l.b16 %v1709
      %v1861 = vunpack.c.l.b16 %v1710
      %v1862 = vunpack.c.l.b16 %v1711
      %v1863 = vunpack.c.l.b16 %v1712
      %v1864 = vunpack.c.l.b16 %v1713
      %v1865 = vunpack.c.l.b16 %v1714
      %v1866 = vunpack.c.l.b16 %v1715
      %v1867 = vunpack.c.l.b16 %v1716
      %v1868 = vunpack.c.l.b16 %v1717
      %v1869 = vunpack.c.l.b16 %v1718
      %v1870 = vunpack.c.l.b16 %v1719
      %v1871 = vunpack.c.l.b16 %v1720
      %v1872 = vunpack.c.l.b16 %v1721
      %v1873 = vunpack.c.l.b16 %v1722
      %v1874 = vunpack.c.l.b16 %v1723
      %v1875 = vunpack.c.l.b16 %v1724
      %v1876 = vunpack.c.l.b16 %v1725
      %v1877 = vunpack.c.l.b16 %v1726
      %v1878 = vunpack.c.l.b16 %v1727
      %v1879 = vunpack.c.l.b16 %v1728
      %v1880 = vunpack.c.l.b16 %v1729
      %v1881 = vunpack.c.l.b16 %v1730
      %v1882 = vunpack.c.l.b16 %v1731
      %v1883 = vunpack.c.l.b16 %v1732
      %v1884 = vunpack.c.l.b16 %v1733
      %v1885 = vunpack.c.l.b16 %v1734
      %v1886 = vunpack.c.l.b16 %v1735
      %v1887 = vunpack.c.l.b16 %v1736
      %v1888 = vunpack.c.l.b16 %v1737
      %v1889 = vunpack.c.l.b16 %v1738
      %v1890 = vunpack.c.l.b16 %v1739
      %v1891 = vunpack.c.l.b16 %v1740
      %v1892 = vunpack.c.l.b16 %v1741
      %v1893 = vunpack.c.l.b16 %v1742
      %v1894 = vunpack.c.l.b16 %v1743
      %v1895 = vunpack.c.l.b16 %v1744
      %v1896 = vunpack.c.l.b16 %v1745
      %v1897 = vunpack.c.l.b16 %v1746
      %v1898 = vunpack.c.l.b16 %v1747
      %v1899 = vunpack.c.l.b16 %v1748
      %v1900 = vunpack.c.l.b16 %v1749
      %v1901 = vunpack.c.l.b16 %v1750
      %v1902 = vunpack.c.l.b16 %v1751
      %v1903 = vunpack.c.l.b16 %v1752
      %v1904 = vunpack.c.l.b16 %v1753
      %v1905 = vunpack.c.l.b16 %v1754
      %v1906 = vunpack.c.l.b16 %v1755
      %v1907 = vunpack.c.l.b16 %v1756
      %v1908 = vunpack.c.l.b16 %v1757
      %v1909 = vunpack.c.l.b16 %v1758
      %v1910 = vunpack.c.l.b16 %v1759
      %v1911 = vunpack.c.l.b16 %v1760
      %v1912 = vpack.c.b16 %v1841, %v1840
      %v1913 = vpack.c.b16 %v1843, %v1842
      %v1914 = vpack.c.b16 %v1845, %v1844
      %v1915 = vpack.c.b16 %v1847, %v1846
      %v1916 = vpack.c.b16 %v1849, %v1848
      %v1917 = vpack.c.b16 %v1851, %v1850
      %v1918 = vpack.c.b16 %v1853, %v1852
      %v1919 = vpack.c.b16 %v1855, %v1854
      %v1920 = vpack.c.b16 %v1857, %v1856
      %v1921 = vpack.c.b16 %v1859, %v1858
      %v1922 = vpack.c.b16 %v1861, %v1860
      %v1923 = vpack.c.b16 %v1863, %v1862
      %v1924 = vpack.c.b16 %v1865, %v1864
      %v1925 = vpack.c.b16 %v1867, %v1866
      %v1926 = vpack.c.b16 %v1869, %v1868
      %v1927 = vpack.c.b16 %v1871, %v1870
      %v1928 = vpack.c.b16 %v1873, %v1872
      %v1929 = vpack.c.b16 %v1875, %v1874
      %v1930 = vpack.c.b16 %v1877, %v1876
      %v1931 = vpack.c.b16 %v1879, %v1878
      %v1932 = vpack.c.b16 %v1881, %v1880
      %v1933 = vpack.c.b16 %v1883, %v1882
      %v1934 = vpack.c.b16 %v1885, %v1884
      %v1935 = vpack.c.b16 %v1887, %v1886
      %v1936 = vpack.c.b16 %v1889, %v1888
      %v1937 = vpack.c.b16 %v1891, %v1890
      %v1938 = vpack.c.b16 %v1893, %v1892
      %v1939 = vpack.c.b16 %v1895, %v1894
      %v1940 = vpack.c.b16 %v1897, %v1896
      %v1941 = vpack.c.b16 %v1899, %v1898
      %v1942 = vpack.c.b16 %v1901, %v1900
      %v1943 = vpack.c.b16 %v1903, %v1902
      %v1944 = vpack.c.b16 %v1905, %v1904
      %v1945 = vpack.c.b16 %v1907, %v1906
      %v1946 = vpack.c.b16 %v1909, %v1908
      %v1947 = vpack.c.b16 %v1911, %v1910
      %v1985 = vsel %vm850, %v1688, 0
      %1987 = vmatprep.subr.bf16.mxu0 0
      %1988 = vmatpush1.bf16.msra.mxu0 %v1912
      %1989 = vmatprep.subr.bf16.mxu0 0
      %1990 = vmatpush1.bf16.msra.mxu0 %v1913
      %1991 = vmatprep.subr.bf16.mxu0 0
      %1992 = vmatpush1.bf16.msra.mxu0 %v1914
      %1993 = vmatprep.subr.bf16.mxu0 0
      %1994 = vmatpush1.bf16.msra.mxu0 %v1915
      %1995 = vmatprep.subr.bf16.mxu0 0
      %1996 = vmatpush1.bf16.msra.mxu0 %v1916
      %1997 = vmatprep.subr.bf16.mxu0 0
      %1998 = vmatpush1.bf16.msra.mxu0 %v1917
      %1999 = vmatprep.subr.bf16.mxu0 0
      %2000 = vmatpush1.bf16.msra.mxu0 %v1918
      %2001 = vmatprep.subr.bf16.mxu0 0
      %2002 = vmatpush1.bf16.msra.mxu0 %v1919
      %2003 = vmatprep.subr.bf16.mxu0 0
      %2004 = vmatpush1.bf16.msra.mxu0 %v1920
      %2005 = vmatprep.subr.bf16.mxu0 0
      %2006 = vmatpush1.bf16.msra.mxu0 %v1921
      %2007 = vmatprep.subr.bf16.mxu0 0
      %2008 = vmatpush1.bf16.msra.mxu0 %v1922
      %2009 = vmatprep.subr.bf16.mxu0 0
      %2010 = vmatpush1.bf16.msra.mxu0 %v1923
      %2011 = vmatprep.subr.bf16.mxu0 0
      %2012 = vmatpush1.bf16.msra.mxu0 %v1924
      %2013 = vmatprep.subr.bf16.mxu0 0
      %2014 = vmatpush1.bf16.msra.mxu0 %v1925
      %2015 = vmatprep.subr.bf16.mxu0 0
      %2016 = vmatpush1.bf16.msra.mxu0 %v1926
      %2017 = vmatprep.subr.bf16.mxu0 0
      %2018 = vmatpush1.bf16.msra.mxu0 %v1927
      %2019 = vmatprep.mubr.bf16.mxu0 %v1685
      %2020 = vmatmul.mubr.bf16.gmra.mrb[0].mxu0 %v1684
      %v2021 = vpop.f32.mrb[0].mxu0
      %v2022 = vadd.f32 %v1766, %v2021
      %v2023 = vpop.f32.mrb[0].mxu0
      %v2024 = vpop.f32.mrb[0].mxu0
      %v2025 = vpop.f32.mrb[0].mxu0
      %2026 = vdwg.mxu0
      %2027 = vmatprep.subr.bf16.mxu0 0
      %2028 = vmatpush1.bf16.msra.mxu0 %v1928
      %2029 = vmatprep.subr.bf16.mxu0 0
      %2030 = vmatpush1.bf16.msra.mxu0 %v1929
      %2031 = vmatprep.subr.bf16.mxu0 0
      %2032 = vmatpush1.bf16.msra.mxu0 %v1930
      %2033 = vmatprep.subr.bf16.mxu0 0
      %2034 = vmatpush1.bf16.msra.mxu0 %v1931
      %2035 = vmatprep.subr.bf16.mxu0 0
      %2036 = vmatpush1.bf16.msra.mxu0 %v1932
      %2037 = vmatprep.subr.bf16.mxu0 0
      %2038 = vmatpush1.bf16.msra.mxu0 %v1933
      %2039 = vmatprep.subr.bf16.mxu0 0
      %2040 = vmatpush1.bf16.msra.mxu0 %v1934
      %2041 = vmatprep.subr.bf16.mxu0 0
      %2042 = vmatpush1.bf16.msra.mxu0 %v1935
      %2043 = vmatprep.subr.bf16.mxu0 0
      %2044 = vmatpush1.bf16.msra.mxu0 %v1936
      %2045 = vmatprep.subr.bf16.mxu0 0
      %2046 = vmatpush1.bf16.msra.mxu0 %v1937
      %2047 = vmatprep.subr.bf16.mxu0 0
      %2048 = vmatpush1.bf16.msra.mxu0 %v1938
      %2049 = vmatprep.subr.bf16.mxu0 0
      %2050 = vmatpush1.bf16.msra.mxu0 %v1939
      %2051 = vmatprep.subr.bf16.mxu0 0
      %2052 = vmatpush1.bf16.msra.mxu0 %v1940
      %2053 = vmatprep.subr.bf16.mxu0 0
      %2054 = vmatpush1.bf16.msra.mxu0 %v1941
      %2055 = vmatprep.subr.bf16.mxu0 0
      %2056 = vmatpush1.bf16.msra.mxu0 %v1942
      %2057 = vmatprep.subr.bf16.mxu0 0
      %2058 = vmatpush1.bf16.msra.mxu0 %v1943
      %2059 = vmatprep.mubr.bf16.mxu0 %v1687
      %2060 = vmatmul.mubr.bf16.gmra.mrb[0].mxu0 %v1686
      %v2061 = vpop.f32.mrb[0].mxu0
      %v2062 = vadd.f32 %v2022, %v2061
      %v2063 = vpop.f32.mrb[0].mxu0
      %v2064 = vpop.f32.mrb[0].mxu0
      %v2065 = vpop.f32.mrb[0].mxu0
      %2066 = vdwg.mxu0
      %2067 = vmatprep.subr.bf16.mxu0 0
      %2068 = vmatpush1.bf16.msra.mxu0 %v1944
      %2069 = vmatprep.subr.bf16.mxu0 0
      %2070 = vmatpush1.bf16.msra.mxu0 %v1945
      %2071 = vmatprep.subr.bf16.mxu0 0
      %2072 = vmatpush1.bf16.msra.mxu0 %v1946
      %2073 = vmatprep.subr.bf16.mxu0 0
      %2074 = vmatpush1.bf16.msra.mxu0 %v1947
      %2075 = vmatprep.subr.bf16.mxu0 0
      %2076 = vmatpush1.bf16.msra.mxu0 0
      %2077 = vmatprep.subr.bf16.mxu0 0
      %2078 = vmatpush1.bf16.msra.mxu0 0
      %2079 = vmatprep.subr.bf16.mxu0 0
      %2080 = vmatpush1.bf16.msra.mxu0 0
      %2081 = vmatprep.subr.bf16.mxu0 0
      %2082 = vmatpush1.bf16.msra.mxu0 0
      %2083 = vmatprep.subr.bf16.mxu0 0
      %2084 = vmatpush1.bf16.msra.mxu0 0
      %2085 = vmatprep.subr.bf16.mxu0 0
      %2086 = vmatpush1.bf16.msra.mxu0 0
      %2087 = vmatprep.subr.bf16.mxu0 0
      %2088 = vmatpush1.bf16.msra.mxu0 0
      %2089 = vmatprep.subr.bf16.mxu0 0
      %2090 = vmatpush1.bf16.msra.mxu0 0
      %2091 = vmatprep.subr.bf16.mxu0 0
      %2092 = vmatpush1.bf16.msra.mxu0 0
      %2093 = vmatprep.subr.bf16.mxu0 0
      %2094 = vmatpush1.bf16.msra.mxu0 0
      %2095 = vmatprep.subr.bf16.mxu0 0
      %2096 = vmatpush1.bf16.msra.mxu0 0
      %2097 = vmatprep.subr.bf16.mxu0 0
      %2098 = vmatpush1.bf16.msra.mxu0 0
      %2099 = vmatprep.mubr.bf16.mxu0 0
      %2100 = vmatmul.mubr.bf16.gmra.mrb[0].mxu0 %v1985
      %v2101 = vpop.f32.mrb[0].mxu0
      %v2102 = vadd.f32 %v2062, %v2101
      %v2103 = vpop.f32.mrb[0].mxu0
      %v2104 = vpop.f32.mrb[0].mxu0
      %v2105 = vpop.f32.mrb[0].mxu0
      %2106 = vdwg.mxu0
      %vm2107 = vcmp.gt.f32.partialorder %v2102, 0.0
      %v2108 = vmin.f32 %v2102, 0.0
      %v2109 = vmul.f32 %v2108, 1.442695
      %v2110 = vpow.pop %v2109
      %v2111 = vsub.f32 %v2110, 1.0
      %v2112 = vsel %vm2107, %v2102, %v2111
      %v2113 = vpack.c.bf16 %v2112, %v2112
      %v2114 = vld [vmem:[%s9] sm:$0xff]
      %v2115 = vld [vmem:[%s9 + $0x8] sm:$0xff]
      %v2116 = vld [vmem:[%s9 + $0x10] sm:$0xff]
      %v2117 = vld [vmem:[%s9 + $0x18] sm:$0xff]
      %v2118 = vld [vmem:[%s9 + $0x20] sm:$0xff]
      %v2119 = vld [vmem:[%s9 + $0x28] sm:$0xff]
      %v2120 = vld [vmem:[%s9 + $0x30] sm:$0xff]
      %v2121 = vld [vmem:[%s9 + $0x38] sm:$0xff]
      %v2122 = vld [vmem:[%s10] sm:$0x3]
      %v2131 = vunpack.c.l.b16 %v2114
      %v2132 = vunpack.c.h.b16 %v2114
      %v2133 = vunpack.c.l.b16 %v2115
      %v2134 = vunpack.c.h.b16 %v2115
      %v2135 = vunpack.c.l.b16 %v2116
      %v2136 = vunpack.c.h.b16 %v2116
      %v2137 = vunpack.c.l.b16 %v2117
      %v2138 = vunpack.c.h.b16 %v2117
      %v2139 = vunpack.c.l.b16 %v2118
      %v2140 = vunpack.c.h.b16 %v2118
      %v2141 = vunpack.c.l.b16 %v2119
      %v2142 = vunpack.c.h.b16 %v2119
      %v2143 = vunpack.c.l.b16 %v2120
      %v2144 = vunpack.c.h.b16 %v2120
      %v2145 = vunpack.c.l.b16 %v2121
      %v2146 = vunpack.c.h.b16 %v2121
      %v2147 = vpack.c.b16 %v2133, %v2131
      %v2148 = vpack.c.b16 %v2134, %v2132
      %v2149 = vpack.c.b16 %v2137, %v2135
      %v2150 = vpack.c.b16 %v2138, %v2136
      %v2151 = vpack.c.b16 %v2141, %v2139
      %v2152 = vpack.c.b16 %v2142, %v2140
      %v2153 = vpack.c.b16 %v2145, %v2143
      %v2154 = vpack.c.b16 %v2146, %v2144
      %v2164 = vlaneseq
      %v2165 = vshrl.u32 %v2164, 7
      %v2166 = vsub.s32 0, %v2165
      %v2167 = vrot.slane %v2122, %v2166
      %v2168 = vlaneseq
      %v2169 = vshrl.u32 %v2168, 7
      %v2170 = vsub.s32 1, %v2169
      %v2171 = vrot.slane %v2122, %v2170
      %v2175 = vsel %vm850, %v2113, 0
      %2177 = vmatprep.subr.bf16.mxu0 %v2148
      %2178 = vmatpush1.bf16.msra.mxu0 %v2147
      %2179 = vmatprep.subr.bf16.mxu0 %v2150
      %2180 = vmatpush1.bf16.msra.mxu0 %v2149
      %2181 = vmatprep.subr.bf16.mxu0 %v2152
      %2182 = vmatpush1.bf16.msra.mxu0 %v2151
      %2183 = vmatprep.subr.bf16.mxu0 %v2154
      %2184 = vmatpush1.bf16.msra.mxu0 %v2153
      %2185 = vmatprep.subr.bf16.mxu0 0
      %2186 = vmatpush1.bf16.msra.mxu0 0
      %2187 = vmatprep.subr.bf16.mxu0 0
      %2188 = vmatpush1.bf16.msra.mxu0 0
      %2189 = vmatprep.subr.bf16.mxu0 0
      %2190 = vmatpush1.bf16.msra.mxu0 0
      %2191 = vmatprep.subr.bf16.mxu0 0
      %2192 = vmatpush1.bf16.msra.mxu0 0
      %2193 = vmatprep.subr.bf16.mxu0 0
      %2194 = vmatpush1.bf16.msra.mxu0 0
      %2195 = vmatprep.subr.bf16.mxu0 0
      %2196 = vmatpush1.bf16.msra.mxu0 0
      %2197 = vmatprep.subr.bf16.mxu0 0
      %2198 = vmatpush1.bf16.msra.mxu0 0
      %2199 = vmatprep.subr.bf16.mxu0 0
      %2200 = vmatpush1.bf16.msra.mxu0 0
      %2201 = vmatprep.subr.bf16.mxu0 0
      %2202 = vmatpush1.bf16.msra.mxu0 0
      %2203 = vmatprep.subr.bf16.mxu0 0
      %2204 = vmatpush1.bf16.msra.mxu0 0
      %2205 = vmatprep.subr.bf16.mxu0 0
      %2206 = vmatpush1.bf16.msra.mxu0 0
      %2207 = vmatprep.subr.bf16.mxu0 0
      %2208 = vmatpush1.bf16.msra.mxu0 0
      %2209 = vmatprep.mubr.bf16.mxu0 0
      %2210 = vmatmul.mubr.bf16.gmra.mrb[0].mxu0 %v2175
      %v2211 = vpop.f32.mrb[0].mxu0
      %v2212 = vadd.f32 %v2167, %v2211
      %v2213 = vpop.f32.mrb[0].mxu0
      %v2214 = vadd.f32 %v2171, %v2213
      %v2215 = vpop.f32.mrb[0].mxu0
      %v2216 = vpop.f32.mrb[0].mxu0
      %2217 = vdwg.mxu0
      %vm2218 = vcmp.gt.f32.partialorder %v2212, 0.0
      %vm2219 = vcmp.gt.f32.partialorder %v2214, 0.0
      %v2220 = vmin.f32 %v2212, 0.0
      %v2221 = vmin.f32 %v2214, 0.0
      %v2222 = vmul.f32 %v2220, 1.442695
      %v2223 = vpow.pop %v2222
      %v2224 = vmul.f32 %v2221, 1.442695
      %v2225 = vpow.pop %v2224
      %v2226 = vsub.f32 %v2223, 1.0
      %v2227 = vsub.f32 %v2225, 1.0
      %v2228 = vsel %vm2218, %v2212, %v2226
      %v2229 = vsel %vm2219, %v2214, %v2227
      %v2230 = vpack.c.bf16 %v2228, %v2228
      %v2231 = vpack.c.bf16 %v2229, %v2229
      %v2232 = vld [vmem:[%s11] sm:$0xf]
      %v2233 = vld [vmem:[%s11 + $0x4] sm:$0xf]
      %v2234 = vld [vmem:[%s11 + $0x8] sm:$0xf]
      %v2235 = vld [vmem:[%s11 + $0xc] sm:$0xf]
      %v2236 = vld [vmem:[%s11 + $0x10] sm:$0xf]
      %v2237 = vld [vmem:[%s11 + $0x14] sm:$0xf]
      %v2238 = vld [vmem:[%s11 + $0x18] sm:$0xf]
      %v2239 = vld [vmem:[%s11 + $0x1c] sm:$0xf]
      %v2240 = vld [vmem:[%s11 + $0x20] sm:$0xf]
      %v2241 = vld [vmem:[%s11 + $0x24] sm:$0xf]
      %v2242 = vld [vmem:[%s11 + $0x28] sm:$0xf]
      %v2243 = vld [vmem:[%s11 + $0x2c] sm:$0xf]
      %v2244 = vld [vmem:[%s11 + $0x30] sm:$0xf]
      %v2245 = vld [vmem:[%s11 + $0x34] sm:$0xf]
      %v2246 = vld [vmem:[%s11 + $0x38] sm:$0xf]
      %v2247 = vld [vmem:[%s11 + $0x3c] sm:$0xf]
      %v2248 = vld [vmem:[%s11 + $0x40] sm:$0xf]
      %v2249 = vld [vmem:[%s11 + $0x44] sm:$0xf]
      %v2250 = vld [vmem:[%s11 + $0x48] sm:$0xf]
      %v2251 = vld [vmem:[%s11 + $0x4c] sm:$0xf]
      %v2252 = vld [vmem:[%s11 + $0x50] sm:$0xf]
      %v2253 = vld [vmem:[%s11 + $0x54] sm:$0xf]
      %v2254 = vld [vmem:[%s11 + $0x58] sm:$0xf]
      %v2255 = vld [vmem:[%s11 + $0x5c] sm:$0xf]
      %v2256 = vld [vmem:[%s11 + $0x60] sm:$0xf]
      %v2257 = vld [vmem:[%s11 + $0x64] sm:$0xf]
      %v2258 = vld [vmem:[%s11 + $0x68] sm:$0xf]
      %v2259 = vld [vmem:[%s11 + $0x6c] sm:$0xf]
      %v2260 = vld [vmem:[%s11 + $0x70] sm:$0xf]
      %v2261 = vld [vmem:[%s11 + $0x74] sm:$0xf]
      %v2262 = vld [vmem:[%s11 + $0x78] sm:$0xf]
      %v2263 = vld [vmem:[%s11 + $0x7c] sm:$0xf]
      %v2264 = vld [vmem:[%s12] sm:$0x1]
      %v2297 = vunpack.c.l.b16 %v2232
      %v2298 = vunpack.c.l.b16 %v2233
      %v2299 = vunpack.c.l.b16 %v2234
      %v2300 = vunpack.c.l.b16 %v2235
      %v2301 = vunpack.c.l.b16 %v2236
      %v2302 = vunpack.c.l.b16 %v2237
      %v2303 = vunpack.c.l.b16 %v2238
      %v2304 = vunpack.c.l.b16 %v2239
      %v2305 = vunpack.c.l.b16 %v2240
      %v2306 = vunpack.c.l.b16 %v2241
      %v2307 = vunpack.c.l.b16 %v2242
      %v2308 = vunpack.c.l.b16 %v2243
      %v2309 = vunpack.c.l.b16 %v2244
      %v2310 = vunpack.c.l.b16 %v2245
      %v2311 = vunpack.c.l.b16 %v2246
      %v2312 = vunpack.c.l.b16 %v2247
      %v2313 = vunpack.c.l.b16 %v2248
      %v2314 = vunpack.c.l.b16 %v2249
      %v2315 = vunpack.c.l.b16 %v2250
      %v2316 = vunpack.c.l.b16 %v2251
      %v2317 = vunpack.c.l.b16 %v2252
      %v2318 = vunpack.c.l.b16 %v2253
      %v2319 = vunpack.c.l.b16 %v2254
      %v2320 = vunpack.c.l.b16 %v2255
      %v2321 = vunpack.c.l.b16 %v2256
      %v2322 = vunpack.c.l.b16 %v2257
      %v2323 = vunpack.c.l.b16 %v2258
      %v2324 = vunpack.c.l.b16 %v2259
      %v2325 = vunpack.c.l.b16 %v2260
      %v2326 = vunpack.c.l.b16 %v2261
      %v2327 = vunpack.c.l.b16 %v2262
      %v2328 = vunpack.c.l.b16 %v2263
      %v2329 = vpack.c.b16 %v2298, %v2297
      %v2330 = vpack.c.b16 %v2300, %v2299
      %v2331 = vpack.c.b16 %v2302, %v2301
      %v2332 = vpack.c.b16 %v2304, %v2303
      %v2333 = vpack.c.b16 %v2306, %v2305
      %v2334 = vpack.c.b16 %v2308, %v2307
      %v2335 = vpack.c.b16 %v2310, %v2309
      %v2336 = vpack.c.b16 %v2312, %v2311
      %v2337 = vpack.c.b16 %v2314, %v2313
      %v2338 = vpack.c.b16 %v2316, %v2315
      %v2339 = vpack.c.b16 %v2318, %v2317
      %v2340 = vpack.c.b16 %v2320, %v2319
      %v2341 = vpack.c.b16 %v2322, %v2321
      %v2342 = vpack.c.b16 %v2324, %v2323
      %v2343 = vpack.c.b16 %v2326, %v2325
      %v2344 = vpack.c.b16 %v2328, %v2327
      %2361 = vmatprep.subr.bf16.mxu0 0
      %2362 = vmatpush1.bf16.msra.mxu0 %v2329
      %2363 = vmatprep.subr.bf16.mxu0 0
      %2364 = vmatpush1.bf16.msra.mxu0 %v2330
      %2365 = vmatprep.subr.bf16.mxu0 0
      %2366 = vmatpush1.bf16.msra.mxu0 %v2331
      %2367 = vmatprep.subr.bf16.mxu0 0
      %2368 = vmatpush1.bf16.msra.mxu0 %v2332
      %2369 = vmatprep.subr.bf16.mxu0 0
      %2370 = vmatpush1.bf16.msra.mxu0 %v2333
      %2371 = vmatprep.subr.bf16.mxu0 0
      %2372 = vmatpush1.bf16.msra.mxu0 %v2334
      %2373 = vmatprep.subr.bf16.mxu0 0
      %2374 = vmatpush1.bf16.msra.mxu0 %v2335
      %2375 = vmatprep.subr.bf16.mxu0 0
      %2376 = vmatpush1.bf16.msra.mxu0 %v2336
      %2377 = vmatprep.subr.bf16.mxu0 0
      %2378 = vmatpush1.bf16.msra.mxu0 %v2337
      %2379 = vmatprep.subr.bf16.mxu0 0
      %2380 = vmatpush1.bf16.msra.mxu0 %v2338
      %2381 = vmatprep.subr.bf16.mxu0 0
      %2382 = vmatpush1.bf16.msra.mxu0 %v2339
      %2383 = vmatprep.subr.bf16.mxu0 0
      %2384 = vmatpush1.bf16.msra.mxu0 %v2340
      %2385 = vmatprep.subr.bf16.mxu0 0
      %2386 = vmatpush1.bf16.msra.mxu0 %v2341
      %2387 = vmatprep.subr.bf16.mxu0 0
      %2388 = vmatpush1.bf16.msra.mxu0 %v2342
      %2389 = vmatprep.subr.bf16.mxu0 0
      %2390 = vmatpush1.bf16.msra.mxu0 %v2343
      %2391 = vmatprep.subr.bf16.mxu0 0
      %2392 = vmatpush1.bf16.msra.mxu0 %v2344
      %2393 = vmatprep.mubr.bf16.mxu0 %v2231
      %2394 = vmatmul.mubr.bf16.gmra.mrb[0].mxu0 %v2230
      %v2395 = vpop.f32.mrb[0].mxu0
      %v2396 = vadd.f32 %v2264, %v2395
      %v2397 = vpop.f32.mrb[0].mxu0
      %v2398 = vpop.f32.mrb[0].mxu0
      %v2399 = vpop.f32.mrb[0].mxu0
      %2400 = vdwg.mxu0
      %v2401 = vlaneseq
      %v2402 = vand.u32 %v2401, 127
      %vm2403 = vcmp.lt.s32.totalorder %v2402, 6
      %v2404 = vsel %vm2403, %v2396, -1e+30
      %vm2405 = vcmask 49152
      %v2406 = vsel %vm2405, %v2404, -inf
      %2407 = vmax.xlane.f32.xlu0 %v2406
      %v2408 = vpop.xlane.xlu0 %2407
      %v2409 = vsub.f32 %v2396, %v2408
      %v2410 = vmul.f32 %v2409, 1.442695
      %v2411 = vpow.pop %v2410
      %v2412 = vsel %vm2403, %v2411, 0.0
      %v2413 = vsel %vm2405, %v2412, 0.0
      %2414 = vadd.xlane.f32.xlu0 %v2413
      %v2415 = vpop.xlane.xlu0 %2414
      %v2416 = vrcp.pop %v2415
      %v2417 = vmul.f32 %v2412, %v2416
      %v2418 = vsel %vm2403, %v2417, %v2396
      %2419 = vst.msk [vmem:[%s436] sm:$0x1] %vm2405, %v2418
      %p2420 = scmp.lt.s32.totalorder %s24, 1
      %s2421 = scalar_select %p2420, %s24, 1
      %s2422 = scalar_lea.vmem %s13, %s2421
      // Predicated region
      $region73: #{ac_forward.1} parent=71 // pred_check
        %p2423 = pneg %p320
      $region74: #{ac_forward.1} parent=71 // pred_check_branch
        %2425 = sbr.rel (%p2423) target = $region76
      $region75: #{ac_forward.1} parent=71 // pred_region
        _
      $region76: #{ac_forward.1} parent=71 // pred_fallthru
        _
    $region72: #{ac_forward.1} parent=5 // pred_fallthru
      _
    %p2426 = scmp.le.s32.totalorder 2, %s19
    // Predicated region
    $region77: #{ac_forward.1} parent=5 // pred_check
      %p2427 = pneg %p2426
    $region78: #{ac_forward.1} parent=5 // pred_check_branch
      %2429 = sbr.rel (%p2427) target = $region80
    $region79: #{ac_forward.1} parent=5 // pred_region
      %s2430 = ssub.s32 %s19, 2
      // Predicated region
      $region81: #{ac_forward.1} parent=79 // pred_check
        %p2431 = pneg %p326
      $region82: #{ac_forward.1} parent=79 // pred_check_branch
        %2433 = sbr.rel (%p2431) target = $region84
      $region83: #{ac_forward.1} parent=79 // pred_region
        %p2434 = scmp.lt.s32.totalorder %s25, 1
        %s2435 = scalar_select %p2434, %s25, 1
        %s2436 = scalar_lea.vmem %s13, %s2435
      $region84: #{ac_forward.1} parent=79 // pred_fallthru
        _
    $region80: #{ac_forward.1} parent=5 // pred_fallthru
      _
  $region6: #{ac_forward.1} parent=0 // loop_footer
    %s23 = sadd.s32 1, %s19
  $region7: #{ac_forward.1} parent=0 // loop_footer_branch
    %18 = sbr.rel target = $region3
  $region8: #{ac_forward.1} parent=0 // loop_exit
    _

</llo_original>
